<compile_context>
chip_gen: v5e
topology: v5e:2x2
jax: 0.10.0
libtpu: 0.0.40
codegen_flags: <defaults>
</compile_context>

<pallas_src>
import math

import jax
import jax.numpy as jnp
from jax.experimental import pallas as pl
from jax.experimental.pallas import tpu as pltpu


# ----------------------------------------------------------------------------
# helpers
# ----------------------------------------------------------------------------
def _pick_tile(dim, target, mult):
    """Largest tile <= target that divides dim and is a multiple of mult.
    Falls back to the full dim (a full-extent block is always legal)."""
    if dim <= target:
        return dim
    for c in range(min(target, dim), 0, -1):
        if dim % c == 0 and c % mult == 0:
            return c
    return dim


def _layernorm_f32(x, g, b):
    mean = jnp.mean(x, axis=-1, keepdims=True)
    xc = x - mean
    var = jnp.mean(xc * xc, axis=-1, keepdims=True)
    return xc * jax.lax.rsqrt(var + 1e-5) * g + b


# ----------------------------------------------------------------------------
# kernel 1: fused LayerNorm -> matmul(+bias)   (used for the QKV projection)
# ----------------------------------------------------------------------------
def _ln_matmul_bias_kernel(x_ref, g_ref, b_ref, w_ref, wb_ref, o_ref):
    x = x_ref[...].astype(jnp.float32)
    y = _layernorm_f32(x, g_ref[...], b_ref[...])
    acc = jnp.dot(y.astype(jnp.bfloat16), w_ref[...],
                  preferred_element_type=jnp.float32)
    o_ref[...] = (acc + wb_ref[...]).astype(o_ref.dtype)


def ln_matmul_bias(x, g, b, w, wb, out_dtype=jnp.bfloat16):
    """x: (M, D) f32, g/b: (1, D) f32, w: (D, N) bf16, wb: (1, N) f32."""
    M, D = x.shape
    N = w.shape[1]
    tm = _pick_tile(M, 256, 8)
    tn = _pick_tile(N, 4096, 128)   # wide N-tile: LN computed once per row-tile
    grid = (M // tm, N // tn)
    return pl.pallas_call(
        _ln_matmul_bias_kernel,
        out_shape=jax.ShapeDtypeStruct((M, N), out_dtype),
        grid=grid,
        in_specs=[
            pl.BlockSpec((tm, D), lambda i, j: (i, 0)),
            pl.BlockSpec((1, D), lambda i, j: (0, 0)),
            pl.BlockSpec((1, D), lambda i, j: (0, 0)),
            pl.BlockSpec((D, tn), lambda i, j: (0, j)),
            pl.BlockSpec((1, tn), lambda i, j: (0, j)),
        ],
        out_specs=pl.BlockSpec((tm, tn), lambda i, j: (i, j)),
        compiler_params=pltpu.CompilerParams(
            dimension_semantics=("parallel", "parallel"),
            vmem_limit_bytes=64 * 1024 * 1024),
    )(x, g, b, w, wb)


# ----------------------------------------------------------------------------
# kernel 2: multi-head attention, one (batch, head, q-tile) per grid step
# ----------------------------------------------------------------------------
def attention(q, k, v, mask, scale):
    """q/k/v: (B, H, S, Dh) bf16, mask: (S, S) f32 -> (B, H, S, Dh) bf16."""
    B, H, S, Dh = q.shape
    tq = _pick_tile(S, 256, 8)

    def kern(q_ref, k_ref, v_ref, m_ref, o_ref):
        qb = q_ref[...]                                   # (tq, Dh) bf16
        kb = k_ref[...]                                   # (S,  Dh) bf16
        # contract over Dh without materializing K^T
        s = jax.lax.dot_general(
            qb, kb, dimension_numbers=(((1,), (1,)), ((), ())),
            preferred_element_type=jnp.float32)           # (tq, S) f32
        s = s * scale + m_ref[...]
        s = s - jnp.max(s, axis=-1, keepdims=True)
        e = jnp.exp(s)
        denom = jnp.sum(e, axis=-1, keepdims=True)
        p = (e * pl.reciprocal(denom, approx=True)).astype(v_ref.dtype)
        o = jnp.dot(p, v_ref[...], preferred_element_type=jnp.float32)
        o_ref[...] = o.astype(o_ref.dtype)

    q_spec = pl.BlockSpec((None, None, tq, Dh), lambda b, h, i: (b, h, i, 0))
    kv_spec = pl.BlockSpec((None, None, S, Dh), lambda b, h, i: (b, h, 0, 0))
    m_spec = pl.BlockSpec((tq, S), lambda b, h, i: (i, 0))
    return pl.pallas_call(
        kern,
        out_shape=jax.ShapeDtypeStruct((B, H, S, Dh), q.dtype),
        grid=(B, H, S // tq),
        in_specs=[q_spec, kv_spec, kv_spec, m_spec],
        out_specs=q_spec,
        compiler_params=pltpu.CompilerParams(
            dimension_semantics=("parallel", "parallel", "parallel")),
    )(q, k, v, mask)


# ----------------------------------------------------------------------------
# kernel 3: tiled matmul + bias + residual (attention output projection)
# ----------------------------------------------------------------------------
def _matmul_bias_residual_kernel(x_ref, w_ref, b_ref, r_ref, o_ref, acc_ref):
    k = pl.program_id(2)

    @pl.when(k == 0)
    def _():
        acc_ref[...] = jnp.zeros_like(acc_ref)

    acc_ref[...] += jnp.dot(x_ref[...].astype(jnp.bfloat16), w_ref[...],
                            preferred_element_type=jnp.float32)

    @pl.when(k == pl.num_programs(2) - 1)
    def _():
        out = acc_ref[...] + b_ref[...] + r_ref[...].astype(jnp.float32)
        o_ref[...] = out.astype(o_ref.dtype)


def matmul_bias_residual(x, w, b, r):
    """x: (M, K) bf16, w: (K, N) bf16, b: (1, N) f32, r: (M, N) f32."""
    M, K = x.shape
    N = w.shape[1]
    tm = _pick_tile(M, 256, 8)
    tn = _pick_tile(N, 512, 128)
    tk = _pick_tile(K, 512, 128)
    grid = (M // tm, N // tn, K // tk)
    return pl.pallas_call(
        _matmul_bias_residual_kernel,
        out_shape=jax.ShapeDtypeStruct((M, N), r.dtype),
        grid=grid,
        in_specs=[
            pl.BlockSpec((tm, tk), lambda i, j, k: (i, k)),
            pl.BlockSpec((tk, tn), lambda i, j, k: (k, j)),
            pl.BlockSpec((1, tn), lambda i, j, k: (0, j)),
            pl.BlockSpec((tm, tn), lambda i, j, k: (i, j)),
        ],
        out_specs=pl.BlockSpec((tm, tn), lambda i, j, k: (i, j)),
        scratch_shapes=[pltpu.VMEM((tm, tn), jnp.float32)],
        compiler_params=pltpu.CompilerParams(
            dimension_semantics=("parallel", "parallel", "arbitrary")),
    )(x, w, b, r)


# ----------------------------------------------------------------------------
# kernel 4: fused MLP  (LN2 -> fc + QuickGELU -> proj -> residual add)
# ----------------------------------------------------------------------------
def _mlp_block_kernel(x_ref, g_ref, b_ref, fcw_ref, fcb_ref, pw_ref, pb_ref,
                      o_ref):
    x = x_ref[...].astype(jnp.float32)
    y = _layernorm_f32(x, g_ref[...], b_ref[...])
    h = jnp.dot(y.astype(jnp.bfloat16), fcw_ref[...],
                preferred_element_type=jnp.float32) + fcb_ref[...]
    h = h * jax.nn.sigmoid(1.702 * h)          # QuickGELU
    out = jnp.dot(h.astype(jnp.bfloat16), pw_ref[...],
                  preferred_element_type=jnp.float32) + pb_ref[...]
    o_ref[...] = (x + out).astype(o_ref.dtype)


def mlp_block(x, g, b, fcw, fcb, pw, pb):
    """x: (M, D) f32; fcw: (D, 4D) bf16; pw: (4D, D) bf16; biases (1, *) f32."""
    M, D = x.shape
    H4 = fcw.shape[1]
    tm = _pick_tile(M, 256, 8)
    grid = (M // tm,)
    # weight blocks are constant across the row grid -> DMA'd once and reused
    return pl.pallas_call(
        _mlp_block_kernel,
        out_shape=jax.ShapeDtypeStruct((M, D), x.dtype),
        grid=grid,
        in_specs=[
            pl.BlockSpec((tm, D), lambda i: (i, 0)),
            pl.BlockSpec((1, D), lambda i: (0, 0)),
            pl.BlockSpec((1, D), lambda i: (0, 0)),
            pl.BlockSpec((D, H4), lambda i: (0, 0)),
            pl.BlockSpec((1, H4), lambda i: (0, 0)),
            pl.BlockSpec((H4, D), lambda i: (0, 0)),
            pl.BlockSpec((1, D), lambda i: (0, 0)),
        ],
        out_specs=pl.BlockSpec((tm, D), lambda i: (i, 0)),
        compiler_params=pltpu.CompilerParams(
            dimension_semantics=("parallel",),
            vmem_limit_bytes=64 * 1024 * 1024),
    )(x, g, b, fcw, fcb, pw, pb)


# ----------------------------------------------------------------------------
# Transformer forward (glue in plain JAX, compute in the kernels above)
# ----------------------------------------------------------------------------
def resblock(x, p, n_head, mask):
    """One ResidualAttentionBlock.  x: (S, B, D) f32."""
    S, B, D = x.shape
    Dh = D // n_head
    M = S * B
    x2 = x.reshape(M, D)

    # LN1 fused into the QKV projection
    qkv = ln_matmul_bias(x2, p["ln1_g"], p["ln1_b"], p["in_w"], p["in_b"])
    qkv = qkv.reshape(S, B, 3, n_head, Dh).transpose(2, 1, 3, 0, 4)
    q, k, v = qkv[0], qkv[1], qkv[2]                      # (B, H, S, Dh) bf16

    o = attention(q, k, v, mask, 1.0 / math.sqrt(Dh))     # (B, H, S, Dh) bf16
    o = o.transpose(2, 0, 1, 3).reshape(M, D)             # (S*B, D)

    # out-projection + bias + residual in one tiled kernel
    x2 = matmul_bias_residual(o, p["out_w"], p["out_b"], x2)

    # LN2 -> fc -> QuickGELU -> proj -> residual, fully fused
    x2 = mlp_block(x2, p["ln2_g"], p["ln2_b"], p["fc_w"], p["fc_b"],
                   p["proj_w"], p["proj_b"])
    return x2.reshape(S, B, D)


def transformer_forward(x, params, n_head, attn_mask=None):
    """Equivalent of Transformer.forward.  x: (S, B, width)."""
    S = x.shape[0]
    if attn_mask is None:
        mask = jnp.zeros((S, S), jnp.float32)
    else:
        mask = attn_mask.astype(jnp.float32)
    x = x.astype(jnp.float32)
    for p in params["blocks"]:
        x = resblock(x, p, n_head, mask)
    return x


# ----------------------------------------------------------------------------
# deterministic parameter init (weights pre-transposed to (K, N), bf16)
# ----------------------------------------------------------------------------
def init_transformer_params(key, width, layers, heads):
    assert width % heads == 0
    attn_std = width ** -0.5
    proj_std = (width ** -0.5) * ((2 * layers) ** -0.5)
    fc_std = (2 * width) ** -0.5
    blocks = []
    for lk in jax.random.split(key, layers):
        ks = jax.random.split(lk, 8)
        blocks.append({
            "in_w":  (attn_std * jax.random.normal(ks[0], (width, 3 * width))
                      ).astype(jnp.bfloat16),
            "in_b":  (0.02 * jax.random.normal(ks[1], (1, 3 * width))
                      ).astype(jnp.float32),
            "out_w": (proj_std * jax.random.normal(ks[2], (width, width))
                      ).astype(jnp.bfloat16),
            "out_b": (0.02 * jax.random.normal(ks[3], (1, width))
                      ).astype(jnp.float32),
            "ln1_g": jnp.ones((1, width), jnp.float32),
            "ln1_b": jnp.zeros((1, width), jnp.float32),
            "ln2_g": jnp.ones((1, width), jnp.float32),
            "ln2_b": jnp.zeros((1, width), jnp.float32),
            "fc_w":  (fc_std * jax.random.normal(ks[4], (width, 4 * width))
                      ).astype(jnp.bfloat16),
            "fc_b":  (0.02 * jax.random.normal(ks[5], (1, 4 * width))
                      ).astype(jnp.float32),
            "proj_w": (proj_std * jax.random.normal(ks[6], (4 * width, width))
                       ).astype(jnp.bfloat16),
            "proj_b": (0.02 * jax.random.normal(ks[7], (1, width))
                       ).astype(jnp.float32),
        })
    return {"blocks": blocks}


# ----------------------------------------------------------------------------
# pure-JAX f32 reference (same math, same params) for a sanity check
# ----------------------------------------------------------------------------
def _ref_resblock(x, p, n_head, mask):
    S, B, D = x.shape
    Dh = D // n_head

    def ln(y, g, b):
        mu = jnp.mean(y, -1, keepdims=True)
        var = jnp.mean((y - mu) ** 2, -1, keepdims=True)
        return (y - mu) * jax.lax.rsqrt(var + 1e-5) * g + b

    h = ln(x, p["ln1_g"][0], p["ln1_b"][0])
    qkv = h @ p["in_w"].astype(jnp.float32) + p["in_b"][0]
    qkv = qkv.reshape(S, B, 3, n_head, Dh).transpose(2, 1, 3, 0, 4)
    q, k, v = qkv[0], qkv[1], qkv[2]
    s = jnp.einsum("bhqd,bhkd->bhqk", q, k) / math.sqrt(Dh) + mask
    pa = jax.nn.softmax(s, axis=-1)
    o = jnp.einsum("bhqk,bhkd->bhqd", pa, v)
    o = o.transpose(2, 0, 1, 3).reshape(S, B, D)
    x = x + o @ p["out_w"].astype(jnp.float32) + p["out_b"][0]
    h = ln(x, p["ln2_g"][0], p["ln2_b"][0])
    h = h @ p["fc_w"].astype(jnp.float32) + p["fc_b"][0]
    h = h * jax.nn.sigmoid(1.702 * h)
    return x + h @ p["proj_w"].astype(jnp.float32) + p["proj_b"][0]


def ref_transformer(x, params, n_head, mask):
    x = x.astype(jnp.float32)
    mask = mask.astype(jnp.float32)
    for p in params["blocks"]:
        x = _ref_resblock(x, p, n_head, mask)
    return x


# ----------------------------------------------------------------------------
if __name__ == "__main__":
    WIDTH, LAYERS, HEADS = 32, 2, 2
    SEQ, BATCH = 8, 2

    key = jax.random.PRNGKey(0)
    kp, kx = jax.random.split(key)
    params = init_transformer_params(kp, WIDTH, LAYERS, HEADS)
    x = jax.random.normal(kx, (SEQ, BATCH, WIDTH), jnp.float32)

    # causal attn_mask (as used by CLIP's text transformer); None also works.
    idx = jnp.arange(SEQ)
    attn_mask = jnp.where(idx[None, :] > idx[:, None], -jnp.inf,
                          0.0).astype(jnp.float32)

    fwd = jax.jit(lambda xx, pp, mm: transformer_forward(xx, pp, HEADS, mm))
    out = fwd(x, params, attn_mask)
    jax.block_until_ready(out)

    ref = ref_transformer(x, params, HEADS, attn_mask)
    assert out.shape == (SEQ, BATCH, WIDTH)
    assert bool(jnp.all(jnp.isfinite(out)))
    # bf16 MXU inputs vs. f32 reference -> small expected deviation
    err = float(jnp.max(jnp.abs(out.astype(jnp.float32) - ref)))
    assert err < 1e-1, f"max abs error vs reference: {err}"
    print("KERNEL_OK")
</pallas_src>

<mosaic_0001>
module attributes {stable_mosaic.version = 11 : i64} {
  func.func @_ln_matmul_bias_kernel(%arg0: i32, %arg1: i32, %arg2: memref<16x32xf32, #tpu.memory_space<vmem>>, %arg3: memref<1x32xf32, #tpu.memory_space<vmem>>, %arg4: memref<1x32xf32, #tpu.memory_space<vmem>>, %arg5: memref<32x96xbf16, #tpu.memory_space<vmem>>, %arg6: memref<1x96xf32, #tpu.memory_space<vmem>>, %arg7: memref<16x96xbf16, #tpu.memory_space<vmem>>) attributes {dimension_semantics = [#tpu.dimension_semantics<parallel>, #tpu.dimension_semantics<parallel>], iteration_bounds = array<i64: 1, 1>, scalar_prefetch = 0 : i64, scratch_operands = 0 : i64, tpu.core_type = #tpu.core_type<tc>, window_params = [{transform_indices = @transform_0, window_bounds = array<i64: 16, 32>}, {pipeline_mode = #tpu.pipeline_mode<synchronous>, transform_indices = @transform_1, window_bounds = array<i64: 1, 32>}, {pipeline_mode = #tpu.pipeline_mode<synchronous>, transform_indices = @transform_2, window_bounds = array<i64: 1, 32>}, {transform_indices = @transform_3, window_bounds = array<i64: 32, 96>}, {transform_indices = @transform_4, window_bounds = array<i64: 1, 96>}, {transform_indices = @transform_5, window_bounds = array<i64: 16, 96>}]} {
    %c0 = arith.constant 0 : index
    %c0_0 = arith.constant 0 : index
    %0 = vector.load %arg2[%c0, %c0_0] : memref<16x32xf32, #tpu.memory_space<vmem>>, vector<16x32xf32>
    %c0_1 = arith.constant 0 : index
    %c0_2 = arith.constant 0 : index
    %1 = vector.load %arg3[%c0_1, %c0_2] : memref<1x32xf32, #tpu.memory_space<vmem>>, vector<1x32xf32>
    %c0_3 = arith.constant 0 : index
    %c0_4 = arith.constant 0 : index
    %2 = vector.load %arg4[%c0_3, %c0_4] : memref<1x32xf32, #tpu.memory_space<vmem>>, vector<1x32xf32>
    %cst = arith.constant dense<0.000000e+00> : vector<16xf32>
    %3 = vector.multi_reduction <add>, %0, %cst [1] : vector<16x32xf32> to vector<16xf32>
    %4 = vector.shape_cast %3 : vector<16xf32> to vector<16x1xf32>
    %cst_5 = arith.constant 3.200000e+01 : f32
    %5 = vector.broadcast %cst_5 : f32 to vector<16x1xf32>
    %6 = arith.divf %4, %5 : vector<16x1xf32>
    %7 = vector.broadcast %6 : vector<16x1xf32> to vector<16x32xf32>
    %8 = arith.subf %0, %7 : vector<16x32xf32>
    %9 = arith.mulf %8, %8 : vector<16x32xf32>
    %cst_6 = arith.constant dense<0.000000e+00> : vector<16xf32>
    %10 = vector.multi_reduction <add>, %9, %cst_6 [1] : vector<16x32xf32> to vector<16xf32>
    %11 = vector.shape_cast %10 : vector<16xf32> to vector<16x1xf32>
    %cst_7 = arith.constant 3.200000e+01 : f32
    %12 = vector.broadcast %cst_7 : f32 to vector<16x1xf32>
    %13 = arith.divf %11, %12 : vector<16x1xf32>
    %cst_8 = arith.constant 9.99999974E-6 : f32
    %14 = vector.broadcast %cst_8 : f32 to vector<16x1xf32>
    %15 = arith.addf %13, %14 : vector<16x1xf32>
    %16 = math.rsqrt %15 : vector<16x1xf32>
    %17 = vector.broadcast %16 : vector<16x1xf32> to vector<16x32xf32>
    %18 = arith.mulf %8, %17 : vector<16x32xf32>
    %19 = vector.broadcast %1 : vector<1x32xf32> to vector<16x32xf32>
    %20 = arith.mulf %18, %19 : vector<16x32xf32>
    %21 = vector.broadcast %2 : vector<1x32xf32> to vector<16x32xf32>
    %22 = arith.addf %20, %21 : vector<16x32xf32>
    %23 = arith.truncf %22 : vector<16x32xf32> to vector<16x32xbf16>
    %c0_9 = arith.constant 0 : index
    %c0_10 = arith.constant 0 : index
    %24 = vector.load %arg5[%c0_9, %c0_10] : memref<32x96xbf16, #tpu.memory_space<vmem>>, vector<32x96xbf16>
    %cst_11 = arith.constant dense<0.000000e+00> : vector<16x96xf32>
    %25 = tpu.matmul %23, %24, %cst_11 {dimension_numbers = #tpu.dot_dimension_numbers<[1], [0], [0], [1], [0, 0, 1, 1], [], []>} : vector<16x32xbf16>, vector<32x96xbf16>, vector<16x96xf32> -> vector<16x96xf32>
    %c0_12 = arith.constant 0 : index
    %c0_13 = arith.constant 0 : index
    %26 = vector.load %arg6[%c0_12, %c0_13] : memref<1x96xf32, #tpu.memory_space<vmem>>, vector<1x96xf32>
    %27 = vector.broadcast %26 : vector<1x96xf32> to vector<16x96xf32>
    %28 = arith.addf %25, %27 : vector<16x96xf32>
    %29 = arith.truncf %28 : vector<16x96xf32> to vector<16x96xbf16>
    %c0_14 = arith.constant 0 : index
    %c0_15 = arith.constant 0 : index
    %30 = vector.load %arg7[%c0_14, %c0_15] : memref<16x96xbf16, #tpu.memory_space<vmem>>, vector<16x96xbf16>
    tpu.vector_store %arg7[%c0_14, %c0_15], %29 {strides = array<i32>} : memref<16x96xbf16, #tpu.memory_space<vmem>>, vector<16x96xbf16>,
    return
  }
  func.func @transform_0(%arg0: i32, %arg1: i32) -> (i32, i32) {
    %c0_i32 = arith.constant 0 : i32
    %c0_i32_0 = arith.constant 0 : i32
    return %arg0, %c0_i32 : i32, i32
  }
  func.func @transform_1(%arg0: i32, %arg1: i32) -> (i32, i32) {
    %c0_i32 = arith.constant 0 : i32
    %c0_i32_0 = arith.constant 0 : i32
    %c0_i32_1 = arith.constant 0 : i32
    return %c0_i32, %c0_i32_0 : i32, i32
  }
  func.func @transform_2(%arg0: i32, %arg1: i32) -> (i32, i32) {
    %c0_i32 = arith.constant 0 : i32
    %c0_i32_0 = arith.constant 0 : i32
    %c0_i32_1 = arith.constant 0 : i32
    return %c0_i32, %c0_i32_0 : i32, i32
  }
  func.func @transform_3(%arg0: i32, %arg1: i32) -> (i32, i32) {
    %c0_i32 = arith.constant 0 : i32
    %c0_i32_0 = arith.constant 0 : i32
    return %c0_i32, %arg1 : i32, i32
  }
  func.func @transform_4(%arg0: i32, %arg1: i32) -> (i32, i32) {
    %c0_i32 = arith.constant 0 : i32
    %c0_i32_0 = arith.constant 0 : i32
    return %c0_i32, %arg1 : i32, i32
  }
  func.func @transform_5(%arg0: i32, %arg1: i32) -> (i32, i32) {
    %c0_i32 = arith.constant 0 : i32
    return %arg0, %arg1 : i32, i32
  }
}

module attributes {stable_mosaic.version = 11 : i64} {
  func.func @_matmul_bias_residual_kernel(%arg0: i32, %arg1: i32, %arg2: i32, %arg3: memref<16x32xbf16, #tpu.memory_space<vmem>>, %arg4: memref<32x32xbf16, #tpu.memory_space<vmem>>, %arg5: memref<1x32xf32, #tpu.memory_space<vmem>>, %arg6: memref<16x32xf32, #tpu.memory_space<vmem>>, %arg7: memref<16x32xf32, #tpu.memory_space<vmem>>, %arg8: memref<16x32xf32, #tpu.memory_space<vmem>>) attributes {dimension_semantics = [#tpu.dimension_semantics<parallel>, #tpu.dimension_semantics<parallel>, #tpu.dimension_semantics<arbitrary>], iteration_bounds = array<i64: 1, 1, 1>, scalar_prefetch = 0 : i64, scratch_operands = 1 : i64, tpu.core_type = #tpu.core_type<tc>, window_params = [{transform_indices = @transform_0, window_bounds = array<i64: 16, 32>}, {transform_indices = @transform_1, window_bounds = array<i64: 32, 32>}, {transform_indices = @transform_2, window_bounds = array<i64: 1, 32>}, {transform_indices = @transform_3, window_bounds = array<i64: 16, 32>}, {transform_indices = @transform_4, window_bounds = array<i64: 16, 32>}]} {
    %c0_i32 = arith.constant 0 : i32
    %0 = arith.cmpi eq, %arg2, %c0_i32 : i32
    %1 = arith.extui %0 : i1 to i32
    %c0_i32_0 = arith.constant 0 : i32
    %2 = arith.cmpi ne, %1, %c0_i32_0 : i32
    scf.if %2 {
      %cst_10 = arith.constant 0.000000e+00 : f32
      %12 = vector.broadcast %cst_10 : f32 to vector<16x32xf32>
      %c0_11 = arith.constant 0 : index
      %c0_12 = arith.constant 0 : index
      %13 = vector.load %arg8[%c0_11, %c0_12] : memref<16x32xf32, #tpu.memory_space<vmem>>, vector<16x32xf32>
      tpu.vector_store %arg8[%c0_11, %c0_12], %12 {strides = array<i32>} : memref<16x32xf32, #tpu.memory_space<vmem>>, vector<16x32xf32>,
    } else {
    }
    %c0 = arith.constant 0 : index
    %c0_1 = arith.constant 0 : index
    %3 = vector.load %arg8[%c0, %c0_1] : memref<16x32xf32, #tpu.memory_space<vmem>>, vector<16x32xf32>
    %c0_2 = arith.constant 0 : index
    %c0_3 = arith.constant 0 : index
    %4 = vector.load %arg3[%c0_2, %c0_3] : memref<16x32xbf16, #tpu.memory_space<vmem>>, vector<16x32xbf16>
    %c0_4 = arith.constant 0 : index
    %c0_5 = arith.constant 0 : index
    %5 = vector.load %arg4[%c0_4, %c0_5] : memref<32x32xbf16, #tpu.memory_space<vmem>>, vector<32x32xbf16>
    %cst = arith.constant dense<0.000000e+00> : vector<16x32xf32>
    %6 = tpu.matmul %4, %5, %cst {dimension_numbers = #tpu.dot_dimension_numbers<[1], [0], [0], [1], [0, 0, 1, 1], [], []>} : vector<16x32xbf16>, vector<32x32xbf16>, vector<16x32xf32> -> vector<16x32xf32>
    %7 = arith.addf %3, %6 : vector<16x32xf32>
    %c0_6 = arith.constant 0 : index
    %c0_7 = arith.constant 0 : index
    %8 = vector.load %arg8[%c0_6, %c0_7] : memref<16x32xf32, #tpu.memory_space<vmem>>, vector<16x32xf32>
    tpu.vector_store %arg8[%c0_6, %c0_7], %7 {strides = array<i32>} : memref<16x32xf32, #tpu.memory_space<vmem>>, vector<16x32xf32>,
    %c0_i32_8 = arith.constant 0 : i32
    %9 = arith.cmpi eq, %arg2, %c0_i32_8 : i32
    %10 = arith.extui %9 : i1 to i32
    %c0_i32_9 = arith.constant 0 : i32
    %11 = arith.cmpi ne, %10, %c0_i32_9 : i32
    scf.if %11 {
      %c0_10 = arith.constant 0 : index
      %c0_11 = arith.constant 0 : index
      %12 = vector.load %arg8[%c0_10, %c0_11] : memref<16x32xf32, #tpu.memory_space<vmem>>, vector<16x32xf32>
      %c0_12 = arith.constant 0 : index
      %c0_13 = arith.constant 0 : index
      %13 = vector.load %arg5[%c0_12, %c0_13] : memref<1x32xf32, #tpu.memory_space<vmem>>, vector<1x32xf32>
      %14 = vector.broadcast %13 : vector<1x32xf32> to vector<16x32xf32>
      %15 = arith.addf %12, %14 : vector<16x32xf32>
      %c0_14 = arith.constant 0 : index
      %c0_15 = arith.constant 0 : index
      %16 = vector.load %arg6[%c0_14, %c0_15] : memref<16x32xf32, #tpu.memory_space<vmem>>, vector<16x32xf32>
      %17 = arith.addf %15, %16 : vector<16x32xf32>
      %c0_16 = arith.constant 0 : index
      %c0_17 = arith.constant 0 : index
      %18 = vector.load %arg7[%c0_16, %c0_17] : memref<16x32xf32, #tpu.memory_space<vmem>>, vector<16x32xf32>
      tpu.vector_store %arg7[%c0_16, %c0_17], %17 {strides = array<i32>} : memref<16x32xf32, #tpu.memory_space<vmem>>, vector<16x32xf32>,
    } else {
    }
    return
  }
  func.func @transform_0(%arg0: i32, %arg1: i32, %arg2: i32) -> (i32, i32) {
    %c0_i32 = arith.constant 0 : i32
    return %arg0, %arg2 : i32, i32
  }
  func.func @transform_1(%arg0: i32, %arg1: i32, %arg2: i32) -> (i32, i32) {
    %c0_i32 = arith.constant 0 : i32
    return %arg2, %arg1 : i32, i32
  }
  func.func @transform_2(%arg0: i32, %arg1: i32, %arg2: i32) -> (i32, i32) {
    %c0_i32 = arith.constant 0 : i32
    %c0_i32_0 = arith.constant 0 : i32
    return %c0_i32, %arg1 : i32, i32
  }
  func.func @transform_3(%arg0: i32, %arg1: i32, %arg2: i32) -> (i32, i32) {
    %c0_i32 = arith.constant 0 : i32
    return %arg0, %arg1 : i32, i32
  }
  func.func @transform_4(%arg0: i32, %arg1: i32, %arg2: i32) -> (i32, i32) {
    %c0_i32 = arith.constant 0 : i32
    return %arg0, %arg1 : i32, i32
  }
}

module attributes {stable_mosaic.version = 11 : i64} {
  func.func @kern(%arg0: i32, %arg1: i32, %arg2: i32, %arg3: memref<1x1x8x16xbf16, #tpu.memory_space<vmem>>, %arg4: memref<1x1x8x16xbf16, #tpu.memory_space<vmem>>, %arg5: memref<1x1x8x16xbf16, #tpu.memory_space<vmem>>, %arg6: memref<8x8xf32, #tpu.memory_space<vmem>>, %arg7: memref<1x1x8x16xbf16, #tpu.memory_space<vmem>>) attributes {dimension_semantics = [#tpu.dimension_semantics<parallel>, #tpu.dimension_semantics<parallel>, #tpu.dimension_semantics<parallel>], iteration_bounds = array<i64: 2, 2, 1>, scalar_prefetch = 0 : i64, scratch_operands = 0 : i64, tpu.core_type = #tpu.core_type<tc>, window_params = [{transform_indices = @transform_0, window_bounds = array<i64: 1, 1, 8, 16>}, {transform_indices = @transform_1, window_bounds = array<i64: 1, 1, 8, 16>}, {transform_indices = @transform_2, window_bounds = array<i64: 1, 1, 8, 16>}, {transform_indices = @transform_3, window_bounds = array<i64: 8, 8>}, {transform_indices = @transform_4, window_bounds = array<i64: 1, 1, 8, 16>}]} {
    %c0 = arith.constant 0 : index
    %c0_0 = arith.constant 0 : index
    %c0_1 = arith.constant 0 : index
    %c0_2 = arith.constant 0 : index
    %0 = vector.load %arg3[%c0, %c0_0, %c0_1, %c0_2] : memref<1x1x8x16xbf16, #tpu.memory_space<vmem>>, vector<1x1x8x16xbf16>
    %1 = vector.shape_cast %0 : vector<1x1x8x16xbf16> to vector<8x16xbf16>
    %c0_3 = arith.constant 0 : index
    %c0_4 = arith.constant 0 : index
    %c0_5 = arith.constant 0 : index
    %c0_6 = arith.constant 0 : index
    %2 = vector.load %arg4[%c0_3, %c0_4, %c0_5, %c0_6] : memref<1x1x8x16xbf16, #tpu.memory_space<vmem>>, vector<1x1x8x16xbf16>
    %3 = vector.shape_cast %2 : vector<1x1x8x16xbf16> to vector<8x16xbf16>
    %cst = arith.constant dense<0.000000e+00> : vector<8x8xf32>
    %4 = tpu.matmul %1, %3, %cst {dimension_numbers = #tpu.dot_dimension_numbers<[1], [1], [0], [0], [0, 0, 1, 0], [], []>} : vector<8x16xbf16>, vector<8x16xbf16>, vector<8x8xf32> -> vector<8x8xf32>
    %cst_7 = arith.constant 2.500000e-01 : f32
    %5 = vector.broadcast %cst_7 : f32 to vector<8x8xf32>
    %6 = arith.mulf %4, %5 : vector<8x8xf32>
    %c0_8 = arith.constant 0 : index
    %c0_9 = arith.constant 0 : index
    %7 = vector.load %arg6[%c0_8, %c0_9] : memref<8x8xf32, #tpu.memory_space<vmem>>, vector<8x8xf32>
    %8 = arith.addf %6, %7 : vector<8x8xf32>
    %cst_10 = arith.constant dense<0xFF800000> : vector<8xf32>
    %9 = vector.multi_reduction <maximumf>, %8, %cst_10 [1] : vector<8x8xf32> to vector<8xf32>
    %10 = vector.shape_cast %9 : vector<8xf32> to vector<8x1xf32>
    %11 = vector.broadcast %10 : vector<8x1xf32> to vector<8x8xf32>
    %12 = arith.subf %8, %11 : vector<8x8xf32>
    %13 = math.exp %12 : vector<8x8xf32>
    %cst_11 = arith.constant dense<0.000000e+00> : vector<8xf32>
    %14 = vector.multi_reduction <add>, %13, %cst_11 [1] : vector<8x8xf32> to vector<8xf32>
    %15 = vector.shape_cast %14 : vector<8xf32> to vector<8x1xf32>
    %16 = tpu.reciprocal %15 {approx = true} : vector<8x1xf32> -> vector<8x1xf32>
    %17 = vector.broadcast %16 : vector<8x1xf32> to vector<8x8xf32>
    %18 = arith.mulf %13, %17 : vector<8x8xf32>
    %19 = arith.truncf %18 : vector<8x8xf32> to vector<8x8xbf16>
    %c0_12 = arith.constant 0 : index
    %c0_13 = arith.constant 0 : index
    %c0_14 = arith.constant 0 : index
    %c0_15 = arith.constant 0 : index
    %20 = vector.load %arg5[%c0_12, %c0_13, %c0_14, %c0_15] : memref<1x1x8x16xbf16, #tpu.memory_space<vmem>>, vector<1x1x8x16xbf16>
    %21 = vector.shape_cast %20 : vector<1x1x8x16xbf16> to vector<8x16xbf16>
    %cst_16 = arith.constant dense<0.000000e+00> : vector<8x16xf32>
    %22 = tpu.matmul %19, %21, %cst_16 {dimension_numbers = #tpu.dot_dimension_numbers<[1], [0], [0], [1], [0, 0, 1, 1], [], []>} : vector<8x8xbf16>, vector<8x16xbf16>, vector<8x16xf32> -> vector<8x16xf32>
    %23 = arith.truncf %22 : vector<8x16xf32> to vector<8x16xbf16>
    %c0_17 = arith.constant 0 : index
    %c0_18 = arith.constant 0 : index
    %c0_19 = arith.constant 0 : index
    %c0_20 = arith.constant 0 : index
    %24 = vector.load %arg7[%c0_17, %c0_18, %c0_19, %c0_20] : memref<1x1x8x16xbf16, #tpu.memory_space<vmem>>, vector<1x1x8x16xbf16>
    %25 = vector.shape_cast %24 : vector<1x1x8x16xbf16> to vector<8x16xbf16>
    %26 = vector.shape_cast %23 : vector<8x16xbf16> to vector<1x1x8x16xbf16>
    tpu.vector_store %arg7[%c0_17, %c0_18, %c0_19, %c0_20], %26 {strides = array<i32>} : memref<1x1x8x16xbf16, #tpu.memory_space<vmem>>, vector<1x1x8x16xbf16>,
    return
  }
  func.func @transform_0(%arg0: i32, %arg1: i32, %arg2: i32) -> (i32, i32, i32, i32) {
    %c0_i32 = arith.constant 0 : i32
    %c0_i32_0 = arith.constant 0 : i32
    return %arg0, %arg1, %arg2, %c0_i32 : i32, i32, i32, i32
  }
  func.func @transform_1(%arg0: i32, %arg1: i32, %arg2: i32) -> (i32, i32, i32, i32) {
    %c0_i32 = arith.constant 0 : i32
    %c0_i32_0 = arith.constant 0 : i32
    %c0_i32_1 = arith.constant 0 : i32
    return %arg0, %arg1, %c0_i32, %c0_i32_0 : i32, i32, i32, i32
  }
  func.func @transform_2(%arg0: i32, %arg1: i32, %arg2: i32) -> (i32, i32, i32, i32) {
    %c0_i32 = arith.constant 0 : i32
    %c0_i32_0 = arith.constant 0 : i32
    %c0_i32_1 = arith.constant 0 : i32
    return %arg0, %arg1, %c0_i32, %c0_i32_0 : i32, i32, i32, i32
  }
  func.func @transform_3(%arg0: i32, %arg1: i32, %arg2: i32) -> (i32, i32) {
    %c0_i32 = arith.constant 0 : i32
    %c0_i32_0 = arith.constant 0 : i32
    return %arg2, %c0_i32 : i32, i32
  }
  func.func @transform_4(%arg0: i32, %arg1: i32, %arg2: i32) -> (i32, i32, i32, i32) {
    %c0_i32 = arith.constant 0 : i32
    %c0_i32_0 = arith.constant 0 : i32
    return %arg0, %arg1, %arg2, %c0_i32 : i32, i32, i32, i32
  }
}

module attributes {stable_mosaic.version = 11 : i64} {
  func.func @_mlp_block_kernel(%arg0: i32, %arg1: memref<16x32xf32, #tpu.memory_space<vmem>>, %arg2: memref<1x32xf32, #tpu.memory_space<vmem>>, %arg3: memref<1x32xf32, #tpu.memory_space<vmem>>, %arg4: memref<32x128xbf16, #tpu.memory_space<vmem>>, %arg5: memref<1x128xf32, #tpu.memory_space<vmem>>, %arg6: memref<128x32xbf16, #tpu.memory_space<vmem>>, %arg7: memref<1x32xf32, #tpu.memory_space<vmem>>, %arg8: memref<16x32xf32, #tpu.memory_space<vmem>>) attributes {dimension_semantics = [#tpu.dimension_semantics<parallel>], iteration_bounds = array<i64: 1>, scalar_prefetch = 0 : i64, scratch_operands = 0 : i64, tpu.core_type = #tpu.core_type<tc>, window_params = [{transform_indices = @transform_0, window_bounds = array<i64: 16, 32>}, {pipeline_mode = #tpu.pipeline_mode<synchronous>, transform_indices = @transform_1, window_bounds = array<i64: 1, 32>}, {pipeline_mode = #tpu.pipeline_mode<synchronous>, transform_indices = @transform_2, window_bounds = array<i64: 1, 32>}, {pipeline_mode = #tpu.pipeline_mode<synchronous>, transform_indices = @transform_3, window_bounds = array<i64: 32, 128>}, {pipeline_mode = #tpu.pipeline_mode<synchronous>, transform_indices = @transform_4, window_bounds = array<i64: 1, 128>}, {pipeline_mode = #tpu.pipeline_mode<synchronous>, transform_indices = @transform_5, window_bounds = array<i64: 128, 32>}, {pipeline_mode = #tpu.pipeline_mode<synchronous>, transform_indices = @transform_6, window_bounds = array<i64: 1, 32>}, {transform_indices = @transform_7, window_bounds = array<i64: 16, 32>}]} {
    %c0 = arith.constant 0 : index
    %c0_0 = arith.constant 0 : index
    %0 = vector.load %arg1[%c0, %c0_0] : memref<16x32xf32, #tpu.memory_space<vmem>>, vector<16x32xf32>
    %c0_1 = arith.constant 0 : index
    %c0_2 = arith.constant 0 : index
    %1 = vector.load %arg2[%c0_1, %c0_2] : memref<1x32xf32, #tpu.memory_space<vmem>>, vector<1x32xf32>
    %c0_3 = arith.constant 0 : index
    %c0_4 = arith.constant 0 : index
    %2 = vector.load %arg3[%c0_3, %c0_4] : memref<1x32xf32, #tpu.memory_space<vmem>>, vector<1x32xf32>
    %cst = arith.constant dense<0.000000e+00> : vector<16xf32>
    %3 = vector.multi_reduction <add>, %0, %cst [1] : vector<16x32xf32> to vector<16xf32>
    %4 = vector.shape_cast %3 : vector<16xf32> to vector<16x1xf32>
    %cst_5 = arith.constant 3.200000e+01 : f32
    %5 = vector.broadcast %cst_5 : f32 to vector<16x1xf32>
    %6 = arith.divf %4, %5 : vector<16x1xf32>
    %7 = vector.broadcast %6 : vector<16x1xf32> to vector<16x32xf32>
    %8 = arith.subf %0, %7 : vector<16x32xf32>
    %9 = arith.mulf %8, %8 : vector<16x32xf32>
    %cst_6 = arith.constant dense<0.000000e+00> : vector<16xf32>
    %10 = vector.multi_reduction <add>, %9, %cst_6 [1] : vector<16x32xf32> to vector<16xf32>
    %11 = vector.shape_cast %10 : vector<16xf32> to vector<16x1xf32>
    %cst_7 = arith.constant 3.200000e+01 : f32
    %12 = vector.broadcast %cst_7 : f32 to vector<16x1xf32>
    %13 = arith.divf %11, %12 : vector<16x1xf32>
    %cst_8 = arith.constant 9.99999974E-6 : f32
    %14 = vector.broadcast %cst_8 : f32 to vector<16x1xf32>
    %15 = arith.addf %13, %14 : vector<16x1xf32>
    %16 = math.rsqrt %15 : vector<16x1xf32>
    %17 = vector.broadcast %16 : vector<16x1xf32> to vector<16x32xf32>
    %18 = arith.mulf %8, %17 : vector<16x32xf32>
    %19 = vector.broadcast %1 : vector<1x32xf32> to vector<16x32xf32>
    %20 = arith.mulf %18, %19 : vector<16x32xf32>
    %21 = vector.broadcast %2 : vector<1x32xf32> to vector<16x32xf32>
    %22 = arith.addf %20, %21 : vector<16x32xf32>
    %23 = arith.truncf %22 : vector<16x32xf32> to vector<16x32xbf16>
    %c0_9 = arith.constant 0 : index
    %c0_10 = arith.constant 0 : index
    %24 = vector.load %arg4[%c0_9, %c0_10] : memref<32x128xbf16, #tpu.memory_space<vmem>>, vector<32x128xbf16>
    %cst_11 = arith.constant dense<0.000000e+00> : vector<16x128xf32>
    %25 = tpu.matmul %23, %24, %cst_11 {dimension_numbers = #tpu.dot_dimension_numbers<[1], [0], [0], [1], [0, 0, 1, 1], [], []>} : vector<16x32xbf16>, vector<32x128xbf16>, vector<16x128xf32> -> vector<16x128xf32>
    %c0_12 = arith.constant 0 : index
    %c0_13 = arith.constant 0 : index
    %26 = vector.load %arg5[%c0_12, %c0_13] : memref<1x128xf32, #tpu.memory_space<vmem>>, vector<1x128xf32>
    %27 = vector.broadcast %26 : vector<1x128xf32> to vector<16x128xf32>
    %28 = arith.addf %25, %27 : vector<16x128xf32>
    %cst_14 = arith.constant 1.702000e+00 : f32
    %29 = vector.broadcast %cst_14 : f32 to vector<16x128xf32>
    %30 = arith.mulf %29, %28 : vector<16x128xf32>
    %31 = arith.negf %30 : vector<16x128xf32>
    %32 = math.exp %31 : vector<16x128xf32>
    %cst_15 = arith.constant 1.000000e+00 : f32
    %33 = vector.broadcast %cst_15 : f32 to vector<16x128xf32>
    %34 = arith.addf %33, %32 : vector<16x128xf32>
    %35 = arith.divf %33, %34 : vector<16x128xf32>
    %36 = arith.mulf %28, %35 : vector<16x128xf32>
    %37 = arith.truncf %36 : vector<16x128xf32> to vector<16x128xbf16>
    %c0_16 = arith.constant 0 : index
    %c0_17 = arith.constant 0 : index
    %38 = vector.load %arg6[%c0_16, %c0_17] : memref<128x32xbf16, #tpu.memory_space<vmem>>, vector<128x32xbf16>
    %cst_18 = arith.constant dense<0.000000e+00> : vector<16x32xf32>
    %39 = tpu.matmul %37, %38, %cst_18 {dimension_numbers = #tpu.dot_dimension_numbers<[1], [0], [0], [1], [0, 0, 1, 1], [], []>} : vector<16x128xbf16>, vector<128x32xbf16>, vector<16x32xf32> -> vector<16x32xf32>
    %c0_19 = arith.constant 0 : index
    %c0_20 = arith.constant 0 : index
    %40 = vector.load %arg7[%c0_19, %c0_20] : memref<1x32xf32, #tpu.memory_space<vmem>>, vector<1x32xf32>
    %41 = vector.broadcast %40 : vector<1x32xf32> to vector<16x32xf32>
    %42 = arith.addf %39, %41 : vector<16x32xf32>
    %43 = arith.addf %0, %42 : vector<16x32xf32>
    %c0_21 = arith.constant 0 : index
    %c0_22 = arith.constant 0 : index
    %44 = vector.load %arg8[%c0_21, %c0_22] : memref<16x32xf32, #tpu.memory_space<vmem>>, vector<16x32xf32>
    tpu.vector_store %arg8[%c0_21, %c0_22], %43 {strides = array<i32>} : memref<16x32xf32, #tpu.memory_space<vmem>>, vector<16x32xf32>,
    return
  }
  func.func @transform_0(%arg0: i32) -> (i32, i32) {
    %c0_i32 = arith.constant 0 : i32
    %c0_i32_0 = arith.constant 0 : i32
    return %arg0, %c0_i32 : i32, i32
  }
  func.func @transform_1(%arg0: i32) -> (i32, i32) {
    %c0_i32 = arith.constant 0 : i32
    %c0_i32_0 = arith.constant 0 : i32
    %c0_i32_1 = arith.constant 0 : i32
    return %c0_i32, %c0_i32_0 : i32, i32
  }
  func.func @transform_2(%arg0: i32) -> (i32, i32) {
    %c0_i32 = arith.constant 0 : i32
    %c0_i32_0 = arith.constant 0 : i32
    %c0_i32_1 = arith.constant 0 : i32
    return %c0_i32, %c0_i32_0 : i32, i32
  }
  func.func @transform_3(%arg0: i32) -> (i32, i32) {
    %c0_i32 = arith.constant 0 : i32
    %c0_i32_0 = arith.constant 0 : i32
    %c0_i32_1 = arith.constant 0 : i32
    return %c0_i32, %c0_i32_0 : i32, i32
  }
  func.func @transform_4(%arg0: i32) -> (i32, i32) {
    %c0_i32 = arith.constant 0 : i32
    %c0_i32_0 = arith.constant 0 : i32
    %c0_i32_1 = arith.constant 0 : i32
    return %c0_i32, %c0_i32_0 : i32, i32
  }
  func.func @transform_5(%arg0: i32) -> (i32, i32) {
    %c0_i32 = arith.constant 0 : i32
    %c0_i32_0 = arith.constant 0 : i32
    %c0_i32_1 = arith.constant 0 : i32
    return %c0_i32, %c0_i32_0 : i32, i32
  }
  func.func @transform_6(%arg0: i32) -> (i32, i32) {
    %c0_i32 = arith.constant 0 : i32
    %c0_i32_0 = arith.constant 0 : i32
    %c0_i32_1 = arith.constant 0 : i32
    return %c0_i32, %c0_i32_0 : i32, i32
  }
  func.func @transform_7(%arg0: i32) -> (i32, i32) {
    %c0_i32 = arith.constant 0 : i32
    %c0_i32_0 = arith.constant 0 : i32
    return %arg0, %c0_i32 : i32, i32
  }
}

module attributes {stable_mosaic.version = 11 : i64} {
  func.func @_ln_matmul_bias_kernel(%arg0: i32, %arg1: i32, %arg2: memref<16x32xf32, #tpu.memory_space<vmem>>, %arg3: memref<1x32xf32, #tpu.memory_space<vmem>>, %arg4: memref<1x32xf32, #tpu.memory_space<vmem>>, %arg5: memref<32x96xbf16, #tpu.memory_space<vmem>>, %arg6: memref<1x96xf32, #tpu.memory_space<vmem>>, %arg7: memref<16x96xbf16, #tpu.memory_space<vmem>>) attributes {dimension_semantics = [#tpu.dimension_semantics<parallel>, #tpu.dimension_semantics<parallel>], iteration_bounds = array<i64: 1, 1>, scalar_prefetch = 0 : i64, scratch_operands = 0 : i64, tpu.core_type = #tpu.core_type<tc>, window_params = [{transform_indices = @transform_0, window_bounds = array<i64: 16, 32>}, {pipeline_mode = #tpu.pipeline_mode<synchronous>, transform_indices = @transform_1, window_bounds = array<i64: 1, 32>}, {pipeline_mode = #tpu.pipeline_mode<synchronous>, transform_indices = @transform_2, window_bounds = array<i64: 1, 32>}, {transform_indices = @transform_3, window_bounds = array<i64: 32, 96>}, {transform_indices = @transform_4, window_bounds = array<i64: 1, 96>}, {transform_indices = @transform_5, window_bounds = array<i64: 16, 96>}]} {
    %c0 = arith.constant 0 : index
    %c0_0 = arith.constant 0 : index
    %0 = vector.load %arg2[%c0, %c0_0] : memref<16x32xf32, #tpu.memory_space<vmem>>, vector<16x32xf32>
    %c0_1 = arith.constant 0 : index
    %c0_2 = arith.constant 0 : index
    %1 = vector.load %arg3[%c0_1, %c0_2] : memref<1x32xf32, #tpu.memory_space<vmem>>, vector<1x32xf32>
    %c0_3 = arith.constant 0 : index
    %c0_4 = arith.constant 0 : index
    %2 = vector.load %arg4[%c0_3, %c0_4] : memref<1x32xf32, #tpu.memory_space<vmem>>, vector<1x32xf32>
    %cst = arith.constant dense<0.000000e+00> : vector<16xf32>
    %3 = vector.multi_reduction <add>, %0, %cst [1] : vector<16x32xf32> to vector<16xf32>
    %4 = vector.shape_cast %3 : vector<16xf32> to vector<16x1xf32>
    %cst_5 = arith.constant 3.200000e+01 : f32
    %5 = vector.broadcast %cst_5 : f32 to vector<16x1xf32>
    %6 = arith.divf %4, %5 : vector<16x1xf32>
    %7 = vector.broadcast %6 : vector<16x1xf32> to vector<16x32xf32>
    %8 = arith.subf %0, %7 : vector<16x32xf32>
    %9 = arith.mulf %8, %8 : vector<16x32xf32>
    %cst_6 = arith.constant dense<0.000000e+00> : vector<16xf32>
    %10 = vector.multi_reduction <add>, %9, %cst_6 [1] : vector<16x32xf32> to vector<16xf32>
    %11 = vector.shape_cast %10 : vector<16xf32> to vector<16x1xf32>
    %cst_7 = arith.constant 3.200000e+01 : f32
    %12 = vector.broadcast %cst_7 : f32 to vector<16x1xf32>
    %13 = arith.divf %11, %12 : vector<16x1xf32>
    %cst_8 = arith.constant 9.99999974E-6 : f32
    %14 = vector.broadcast %cst_8 : f32 to vector<16x1xf32>
    %15 = arith.addf %13, %14 : vector<16x1xf32>
    %16 = math.rsqrt %15 : vector<16x1xf32>
    %17 = vector.broadcast %16 : vector<16x1xf32> to vector<16x32xf32>
    %18 = arith.mulf %8, %17 : vector<16x32xf32>
    %19 = vector.broadcast %1 : vector<1x32xf32> to vector<16x32xf32>
    %20 = arith.mulf %18, %19 : vector<16x32xf32>
    %21 = vector.broadcast %2 : vector<1x32xf32> to vector<16x32xf32>
    %22 = arith.addf %20, %21 : vector<16x32xf32>
    %23 = arith.truncf %22 : vector<16x32xf32> to vector<16x32xbf16>
    %c0_9 = arith.constant 0 : index
    %c0_10 = arith.constant 0 : index
    %24 = vector.load %arg5[%c0_9, %c0_10] : memref<32x96xbf16, #tpu.memory_space<vmem>>, vector<32x96xbf16>
    %cst_11 = arith.constant dense<0.000000e+00> : vector<16x96xf32>
    %25 = tpu.matmul %23, %24, %cst_11 {dimension_numbers = #tpu.dot_dimension_numbers<[1], [0], [0], [1], [0, 0, 1, 1], [], []>} : vector<16x32xbf16>, vector<32x96xbf16>, vector<16x96xf32> -> vector<16x96xf32>
    %c0_12 = arith.constant 0 : index
    %c0_13 = arith.constant 0 : index
    %26 = vector.load %arg6[%c0_12, %c0_13] : memref<1x96xf32, #tpu.memory_space<vmem>>, vector<1x96xf32>
    %27 = vector.broadcast %26 : vector<1x96xf32> to vector<16x96xf32>
    %28 = arith.addf %25, %27 : vector<16x96xf32>
    %29 = arith.truncf %28 : vector<16x96xf32> to vector<16x96xbf16>
    %c0_14 = arith.constant 0 : index
    %c0_15 = arith.constant 0 : index
    %30 = vector.load %arg7[%c0_14, %c0_15] : memref<16x96xbf16, #tpu.memory_space<vmem>>, vector<16x96xbf16>
    tpu.vector_store %arg7[%c0_14, %c0_15], %29 {strides = array<i32>} : memref<16x96xbf16, #tpu.memory_space<vmem>>, vector<16x96xbf16>,
    return
  }
  func.func @transform_0(%arg0: i32, %arg1: i32) -> (i32, i32) {
    %c0_i32 = arith.constant 0 : i32
    %c0_i32_0 = arith.constant 0 : i32
    return %arg0, %c0_i32 : i32, i32
  }
  func.func @transform_1(%arg0: i32, %arg1: i32) -> (i32, i32) {
    %c0_i32 = arith.constant 0 : i32
    %c0_i32_0 = arith.constant 0 : i32
    %c0_i32_1 = arith.constant 0 : i32
    return %c0_i32, %c0_i32_0 : i32, i32
  }
  func.func @transform_2(%arg0: i32, %arg1: i32) -> (i32, i32) {
    %c0_i32 = arith.constant 0 : i32
    %c0_i32_0 = arith.constant 0 : i32
    %c0_i32_1 = arith.constant 0 : i32
    return %c0_i32, %c0_i32_0 : i32, i32
  }
  func.func @transform_3(%arg0: i32, %arg1: i32) -> (i32, i32) {
    %c0_i32 = arith.constant 0 : i32
    %c0_i32_0 = arith.constant 0 : i32
    return %c0_i32, %arg1 : i32, i32
  }
  func.func @transform_4(%arg0: i32, %arg1: i32) -> (i32, i32) {
    %c0_i32 = arith.constant 0 : i32
    %c0_i32_0 = arith.constant 0 : i32
    return %c0_i32, %arg1 : i32, i32
  }
  func.func @transform_5(%arg0: i32, %arg1: i32) -> (i32, i32) {
    %c0_i32 = arith.constant 0 : i32
    return %arg0, %arg1 : i32, i32
  }
}

module attributes {stable_mosaic.version = 11 : i64} {
  func.func @_mlp_block_kernel(%arg0: i32, %arg1: memref<16x32xf32, #tpu.memory_space<vmem>>, %arg2: memref<1x32xf32, #tpu.memory_space<vmem>>, %arg3: memref<1x32xf32, #tpu.memory_space<vmem>>, %arg4: memref<32x128xbf16, #tpu.memory_space<vmem>>, %arg5: memref<1x128xf32, #tpu.memory_space<vmem>>, %arg6: memref<128x32xbf16, #tpu.memory_space<vmem>>, %arg7: memref<1x32xf32, #tpu.memory_space<vmem>>, %arg8: memref<16x32xf32, #tpu.memory_space<vmem>>) attributes {dimension_semantics = [#tpu.dimension_semantics<parallel>], iteration_bounds = array<i64: 1>, scalar_prefetch = 0 : i64, scratch_operands = 0 : i64, tpu.core_type = #tpu.core_type<tc>, window_params = [{transform_indices = @transform_0, window_bounds = array<i64: 16, 32>}, {pipeline_mode = #tpu.pipeline_mode<synchronous>, transform_indices = @transform_1, window_bounds = array<i64: 1, 32>}, {pipeline_mode = #tpu.pipeline_mode<synchronous>, transform_indices = @transform_2, window_bounds = array<i64: 1, 32>}, {pipeline_mode = #tpu.pipeline_mode<synchronous>, transform_indices = @transform_3, window_bounds = array<i64: 32, 128>}, {pipeline_mode = #tpu.pipeline_mode<synchronous>, transform_indices = @transform_4, window_bounds = array<i64: 1, 128>}, {pipeline_mode = #tpu.pipeline_mode<synchronous>, transform_indices = @transform_5, window_bounds = array<i64: 128, 32>}, {pipeline_mode = #tpu.pipeline_mode<synchronous>, transform_indices = @transform_6, window_bounds = array<i64: 1, 32>}, {transform_indices = @transform_7, window_bounds = array<i64: 16, 32>}]} {
    %c0 = arith.constant 0 : index
    %c0_0 = arith.constant 0 : index
    %0 = vector.load %arg1[%c0, %c0_0] : memref<16x32xf32, #tpu.memory_space<vmem>>, vector<16x32xf32>
    %c0_1 = arith.constant 0 : index
    %c0_2 = arith.constant 0 : index
    %1 = vector.load %arg2[%c0_1, %c0_2] : memref<1x32xf32, #tpu.memory_space<vmem>>, vector<1x32xf32>
    %c0_3 = arith.constant 0 : index
    %c0_4 = arith.constant 0 : index
    %2 = vector.load %arg3[%c0_3, %c0_4] : memref<1x32xf32, #tpu.memory_space<vmem>>, vector<1x32xf32>
    %cst = arith.constant dense<0.000000e+00> : vector<16xf32>
    %3 = vector.multi_reduction <add>, %0, %cst [1] : vector<16x32xf32> to vector<16xf32>
    %4 = vector.shape_cast %3 : vector<16xf32> to vector<16x1xf32>
    %cst_5 = arith.constant 3.200000e+01 : f32
    %5 = vector.broadcast %cst_5 : f32 to vector<16x1xf32>
    %6 = arith.divf %4, %5 : vector<16x1xf32>
    %7 = vector.broadcast %6 : vector<16x1xf32> to vector<16x32xf32>
    %8 = arith.subf %0, %7 : vector<16x32xf32>
    %9 = arith.mulf %8, %8 : vector<16x32xf32>
    %cst_6 = arith.constant dense<0.000000e+00> : vector<16xf32>
    %10 = vector.multi_reduction <add>, %9, %cst_6 [1] : vector<16x32xf32> to vector<16xf32>
    %11 = vector.shape_cast %10 : vector<16xf32> to vector<16x1xf32>
    %cst_7 = arith.constant 3.200000e+01 : f32
    %12 = vector.broadcast %cst_7 : f32 to vector<16x1xf32>
    %13 = arith.divf %11, %12 : vector<16x1xf32>
    %cst_8 = arith.constant 9.99999974E-6 : f32
    %14 = vector.broadcast %cst_8 : f32 to vector<16x1xf32>
    %15 = arith.addf %13, %14 : vector<16x1xf32>
    %16 = math.rsqrt %15 : vector<16x1xf32>
    %17 = vector.broadcast %16 : vector<16x1xf32> to vector<16x32xf32>
    %18 = arith.mulf %8, %17 : vector<16x32xf32>
    %19 = vector.broadcast %1 : vector<1x32xf32> to vector<16x32xf32>
    %20 = arith.mulf %18, %19 : vector<16x32xf32>
    %21 = vector.broadcast %2 : vector<1x32xf32> to vector<16x32xf32>
    %22 = arith.addf %20, %21 : vector<16x32xf32>
    %23 = arith.truncf %22 : vector<16x32xf32> to vector<16x32xbf16>
    %c0_9 = arith.constant 0 : index
    %c0_10 = arith.constant 0 : index
    %24 = vector.load %arg4[%c0_9, %c0_10] : memref<32x128xbf16, #tpu.memory_space<vmem>>, vector<32x128xbf16>
    %cst_11 = arith.constant dense<0.000000e+00> : vector<16x128xf32>
    %25 = tpu.matmul %23, %24, %cst_11 {dimension_numbers = #tpu.dot_dimension_numbers<[1], [0], [0], [1], [0, 0, 1, 1], [], []>} : vector<16x32xbf16>, vector<32x128xbf16>, vector<16x128xf32> -> vector<16x128xf32>
    %c0_12 = arith.constant 0 : index
    %c0_13 = arith.constant 0 : index
    %26 = vector.load %arg5[%c0_12, %c0_13] : memref<1x128xf32, #tpu.memory_space<vmem>>, vector<1x128xf32>
    %27 = vector.broadcast %26 : vector<1x128xf32> to vector<16x128xf32>
    %28 = arith.addf %25, %27 : vector<16x128xf32>
    %cst_14 = arith.constant 1.702000e+00 : f32
    %29 = vector.broadcast %cst_14 : f32 to vector<16x128xf32>
    %30 = arith.mulf %29, %28 : vector<16x128xf32>
    %31 = arith.negf %30 : vector<16x128xf32>
    %32 = math.exp %31 : vector<16x128xf32>
    %cst_15 = arith.constant 1.000000e+00 : f32
    %33 = vector.broadcast %cst_15 : f32 to vector<16x128xf32>
    %34 = arith.addf %33, %32 : vector<16x128xf32>
    %35 = arith.divf %33, %34 : vector<16x128xf32>
    %36 = arith.mulf %28, %35 : vector<16x128xf32>
    %37 = arith.truncf %36 : vector<16x128xf32> to vector<16x128xbf16>
    %c0_16 = arith.constant 0 : index
    %c0_17 = arith.constant 0 : index
    %38 = vector.load %arg6[%c0_16, %c0_17] : memref<128x32xbf16, #tpu.memory_space<vmem>>, vector<128x32xbf16>
    %cst_18 = arith.constant dense<0.000000e+00> : vector<16x32xf32>
    %39 = tpu.matmul %37, %38, %cst_18 {dimension_numbers = #tpu.dot_dimension_numbers<[1], [0], [0], [1], [0, 0, 1, 1], [], []>} : vector<16x128xbf16>, vector<128x32xbf16>, vector<16x32xf32> -> vector<16x32xf32>
    %c0_19 = arith.constant 0 : index
    %c0_20 = arith.constant 0 : index
    %40 = vector.load %arg7[%c0_19, %c0_20] : memref<1x32xf32, #tpu.memory_space<vmem>>, vector<1x32xf32>
    %41 = vector.broadcast %40 : vector<1x32xf32> to vector<16x32xf32>
    %42 = arith.addf %39, %41 : vector<16x32xf32>
    %43 = arith.addf %0, %42 : vector<16x32xf32>
    %c0_21 = arith.constant 0 : index
    %c0_22 = arith.constant 0 : index
    %44 = vector.load %arg8[%c0_21, %c0_22] : memref<16x32xf32, #tpu.memory_space<vmem>>, vector<16x32xf32>
    tpu.vector_store %arg8[%c0_21, %c0_22], %43 {strides = array<i32>} : memref<16x32xf32, #tpu.memory_space<vmem>>, vector<16x32xf32>,
    return
  }
  func.func @transform_0(%arg0: i32) -> (i32, i32) {
    %c0_i32 = arith.constant 0 : i32
    %c0_i32_0 = arith.constant 0 : i32
    return %arg0, %c0_i32 : i32, i32
  }
  func.func @transform_1(%arg0: i32) -> (i32, i32) {
    %c0_i32 = arith.constant 0 : i32
    %c0_i32_0 = arith.constant 0 : i32
    %c0_i32_1 = arith.constant 0 : i32
    return %c0_i32, %c0_i32_0 : i32, i32
  }
  func.func @transform_2(%arg0: i32) -> (i32, i32) {
    %c0_i32 = arith.constant 0 : i32
    %c0_i32_0 = arith.constant 0 : i32
    %c0_i32_1 = arith.constant 0 : i32
    return %c0_i32, %c0_i32_0 : i32, i32
  }
  func.func @transform_3(%arg0: i32) -> (i32, i32) {
    %c0_i32 = arith.constant 0 : i32
    %c0_i32_0 = arith.constant 0 : i32
    %c0_i32_1 = arith.constant 0 : i32
    return %c0_i32, %c0_i32_0 : i32, i32
  }
  func.func @transform_4(%arg0: i32) -> (i32, i32) {
    %c0_i32 = arith.constant 0 : i32
    %c0_i32_0 = arith.constant 0 : i32
    %c0_i32_1 = arith.constant 0 : i32
    return %c0_i32, %c0_i32_0 : i32, i32
  }
  func.func @transform_5(%arg0: i32) -> (i32, i32) {
    %c0_i32 = arith.constant 0 : i32
    %c0_i32_0 = arith.constant 0 : i32
    %c0_i32_1 = arith.constant 0 : i32
    return %c0_i32, %c0_i32_0 : i32, i32
  }
  func.func @transform_6(%arg0: i32) -> (i32, i32) {
    %c0_i32 = arith.constant 0 : i32
    %c0_i32_0 = arith.constant 0 : i32
    %c0_i32_1 = arith.constant 0 : i32
    return %c0_i32, %c0_i32_0 : i32, i32
  }
  func.func @transform_7(%arg0: i32) -> (i32, i32) {
    %c0_i32 = arith.constant 0 : i32
    %c0_i32_0 = arith.constant 0 : i32
    return %arg0, %c0_i32 : i32, i32
  }
}

</mosaic_0001>

<llo_original>
// kernel: _lambda_.8
$region0: #{_lambda_.8}
  #allocation0 [shape = 'u32[]', space=smem, size = 0x4, offset = 0x4, fixed_abs, tag = 'smem constant byte address 0x4 - core index']
  #allocation1 [shape = 'u32[72,128]{1,0:T(1,128)}', space=vmem, size = 0x9000, scoped, tag = 'internal scratch']
  %s0 = inlined_call_operand.hbm [shape: f32[16,32], index: 0, kind: input, shape index: {}]
  %s1 = inlined_call_operand.vmem [shape: f32[1,32], index: 1, kind: input, shape index: {}]
  %s2 = inlined_call_operand.vmem [shape: f32[1,32], index: 2, kind: input, shape index: {}]
  %s3 = inlined_call_operand.hbm [shape: bf16[32,96], index: 3, kind: input, shape index: {}]
  %s4 = inlined_call_operand.vmem [shape: f32[1,96], index: 4, kind: input, shape index: {}]
  %s5 = inlined_call_operand.vmem [shape: bf16[16,96], index: 5, kind: output, shape index: {}]
  %s6 = sld [smem:[#allocation0]]
  $region38: #{_lambda_.8} parent=0
    _
  %s8 = ssub.s32 1, %s6
  %s9 = scalar_select 0, %s8, %s6
  $region1: #{_lambda_.8} parent=0
    #allocation2 [shape = 'u8[8192]{0}', space=vmem, size = 0x2000, scoped, tag = 'input window, operand 0, single buffered']
    #allocation3 [shape = 's32[1]{0}', space=sflag, size = 0x4, scoped, tag = 'scoped memory for _lambda_.8']
    #allocation4 [shape = 'u8[8192]{0}', space=vmem, size = 0x2000, scoped, tag = 'input window, operand 3, single buffered']
    #allocation5 [shape = 's32[1]{0}', space=sflag, size = 0x4, scoped, tag = 'scoped memory for _lambda_.8']
    %10 = vsyncpa [#allocation3], 0
    %11 = vsyncpa [#allocation5], 0
    // Predicated region
    $region2: #{_lambda_.8} parent=1 // pred_check
      _
    $region3: #{_lambda_.8} parent=1 // pred_check_branch
      %13 = sbr.rel (0) target = $region5
    $region4: #{_lambda_.8} parent=1 // pred_region
      %15 = vsyncadd [#allocation3], 0
      %s16 = sshll.u32 %s0, 4
      %s17 = int_to_ptr.hbm [resolvable:$true] %s16
      %s18 = sshll.u32 [#allocation2], 4
      %s19 = int_to_ptr.vmem [resolvable:$true] %s18
      %24 = dma.hbm_to_vmem [thread:$0]  %s17, 256, %s19, [#allocation3], 128, 128, 8
    $region5: #{_lambda_.8} parent=1 // pred_fallthru
      _
    // Predicated region
    $region6: #{_lambda_.8} parent=1 // pred_check
      _
    $region7: #{_lambda_.8} parent=1 // pred_check_branch
      %26 = sbr.rel (0) target = $region9
    $region8: #{_lambda_.8} parent=1 // pred_region
      _
    $region9: #{_lambda_.8} parent=1 // pred_fallthru
      _
    // Predicated region
    $region10: #{_lambda_.8} parent=1 // pred_check
      _
    $region11: #{_lambda_.8} parent=1 // pred_check_branch
      %28 = sbr.rel (0) target = $region13
    $region12: #{_lambda_.8} parent=1 // pred_region
      _
    $region13: #{_lambda_.8} parent=1 // pred_fallthru
      _
    // Predicated region
    $region14: #{_lambda_.8} parent=1 // pred_check
      _
    $region15: #{_lambda_.8} parent=1 // pred_check_branch
      %30 = sbr.rel (0) target = $region17
    $region16: #{_lambda_.8} parent=1 // pred_region
      %32 = vsyncadd [#allocation5], 0
      %s33 = sshll.u32 %s3, 4
      %s34 = int_to_ptr.hbm [resolvable:$true] %s33
      %s35 = sshll.u32 [#allocation4], 4
      %s36 = int_to_ptr.vmem [resolvable:$true] %s35
      %41 = dma.hbm_to_vmem [thread:$0]  %s34, 256, %s36, [#allocation5], 64, 64, 4
    $region17: #{_lambda_.8} parent=1 // pred_fallthru
      _
    // Predicated region
    $region18: #{_lambda_.8} parent=1 // pred_check
      _
    $region19: #{_lambda_.8} parent=1 // pred_check_branch
      %43 = sbr.rel (0) target = $region21
    $region20: #{_lambda_.8} parent=1 // pred_region
      _
    $region21: #{_lambda_.8} parent=1 // pred_fallthru
      _
    // Predicated region
    $region22: #{_lambda_.8} parent=1 // pred_check
      _
    $region23: #{_lambda_.8} parent=1 // pred_check_branch
      %45 = sbr.rel (0) target = $region25
    $region24: #{_lambda_.8} parent=1 // pred_region
      %47 = dma.done [#allocation3], 256
    $region25: #{_lambda_.8} parent=1 // pred_fallthru
      _
    // Predicated region
    $region26: #{_lambda_.8} parent=1 // pred_check
      _
    $region27: #{_lambda_.8} parent=1 // pred_check_branch
      %49 = sbr.rel (0) target = $region29
    $region28: #{_lambda_.8} parent=1 // pred_region
      %51 = dma.done [#allocation5], 256
    $region29: #{_lambda_.8} parent=1 // pred_fallthru
      _
    %v53 = vld [vmem:[#allocation2] sm:$0xff]
    %v54 = vld [vmem:[#allocation2 + $0x8] sm:$0xff]
    %v55 = vld [vmem:[%s1] sm:$0x1]
    %v56 = vld [vmem:[%s2] sm:$0x1]
    %vm57 = vcmask 261120
    %v58 = vsel %vm57, %v53, 0.0
    %59 = vadd.xlane.f32.xlu0 %v58
    %v60 = vpop.xlane.xlu0 %59
    %v61 = vsel %vm57, %v54, 0.0
    %62 = vadd.xlane.f32.xlu0 %v61
    %v63 = vpop.xlane.xlu0 %62
    %v64 = vrcp.pop 32.0
    %v65 = vmul.f32 32.0, %v64
    %v66 = vsub.f32 1.0, %v65
    %v67 = vmul.f32 %v64, %v66
    %v68 = vadd.f32 %v64, %v67
    %vm69 = vweird.f32 %v64
    %v70 = vsel %vm69, %v64, %v68
    %v71 = vmul.f32 %v60, %v70
    %v72 = vmul.f32 %v63, %v70
    %v73 = vsub.f32 %v53, %v71
    %v74 = vsub.f32 %v54, %v72
    %v75 = vmul.f32 %v73, %v73
    %v76 = vmul.f32 %v74, %v74
    %v77 = vsel %vm57, %v75, 0.0
    %78 = vadd.xlane.f32.xlu0 %v77
    %v79 = vpop.xlane.xlu0 %78
    %v80 = vsel %vm57, %v76, 0.0
    %81 = vadd.xlane.f32.xlu0 %v80
    %v82 = vpop.xlane.xlu0 %81
    %v83 = vmul.f32 %v79, %v70
    %v84 = vmul.f32 %v82, %v70
    %v85 = vadd.f32 %v83, 1e-05
    %v86 = vadd.f32 %v84, 1e-05
    %v87 = vrsqrt.pop %v85
    %v88 = vmul.f32 %v87, %v85
    %v89 = vmul.f32 %v88, %v87
    %v90 = vmul.f32 0.5, %v89
    %v91 = vsub.f32 1.5, %v90
    %v92 = vmul.f32 %v87, %v91
    %vm93 = vweird.f32 %v85
    %vm94 = vweird.f32 %v87
    %vm95 = vmor %vm93, %vm94
    %v96 = vsel %vm95, %v87, %v92
    %v97 = vrsqrt.pop %v86
    %v98 = vmul.f32 %v97, %v86
    %v99 = vmul.f32 %v98, %v97
    %v100 = vmul.f32 0.5, %v99
    %v101 = vsub.f32 1.5, %v100
    %v102 = vmul.f32 %v97, %v101
    %vm103 = vweird.f32 %v86
    %vm104 = vweird.f32 %v97
    %vm105 = vmor %vm103, %vm104
    %v106 = vsel %vm105, %v97, %v102
    %v107 = vmul.f32 %v73, %v96
    %v108 = vmul.f32 %v74, %v106
    %v110 = vperm.slane %v55, 0
    %v112 = vmul.f32 %v107, %v110
    %v113 = vmul.f32 %v108, %v110
    %v115 = vperm.slane %v56, 0
    %v117 = vadd.f32 %v112, %v115
    %v118 = vadd.f32 %v113, %v115
    %v119 = vpack.c.bf16 %v118, %v117
    %v120 = vld [vmem:[#allocation4] sm:$0xf]
    %v121 = vld [vmem:[#allocation4 + $0x4] sm:$0xf]
    %v122 = vld [vmem:[#allocation4 + $0x8] sm:$0xf]
    %v123 = vld [vmem:[#allocation4 + $0xc] sm:$0xf]
    %v124 = vld [vmem:[%s4] sm:$0x1]
    %v126 = vperm.slane %v124, 0
    %v132 = vunpack.c.l.b16 %v120
    %v133 = vunpack.c.l.b16 %v121
    %v134 = vunpack.c.l.b16 %v122
    %v135 = vunpack.c.l.b16 %v123
    %v136 = vpack.c.b16 %v133, %v132
    %v137 = vpack.c.b16 %v135, %v134
    %v141 = vsel %vm57, %v119, 0
    %143 = vmatpush.bf16.msra.mxu0 0
    %144 = vmatpush.bf16.msra.mxu0 0
    %145 = vmatpush.bf16.msra.mxu0 0
    %146 = vmatpush.bf16.msra.mxu0 0
    %147 = vmatpush.bf16.msra.mxu0 0
    %148 = vmatpush.bf16.msra.mxu0 0
    %149 = vmatpush.bf16.msra.mxu0 %v137
    %150 = vmatpush.bf16.msra.mxu0 %v136
    %151 = vmatmul.bf16.gmra.mxu0 %v141
    %v152 = vpop.f32.mrf.mxu0
    %v153 = vadd.f32 %v126, %v152
    %v154 = vpop.f32.mrf.mxu0
    %v155 = vadd.f32 %v126, %v154
    %156 = vdwg.mxu0
    %v157 = vpack.c.bf16 %v153, %v153
    %v158 = vpack.c.bf16 %v155, %v155
    %vm159 = vcmask 781312
    %160 = vst.msk [vmem:[%s5] sm:$0xf] %vm159, %v157
    %161 = vst.msk [vmem:[%s5 + $0x4] sm:$0xf] %vm159, %v158
    // Predicated region
    $region30: #{_lambda_.8} parent=1 // pred_check
      _
    $region31: #{_lambda_.8} parent=1 // pred_check_branch
      %163 = sbr.rel (0) target = $region33
    $region32: #{_lambda_.8} parent=1 // pred_region
      _
    $region33: #{_lambda_.8} parent=1 // pred_fallthru
      _
    // Predicated region
    $region34: #{_lambda_.8} parent=1 // pred_check
      _
    $region35: #{_lambda_.8} parent=1 // pred_check_branch
      %165 = sbr.rel (0) target = $region37
    $region36: #{_lambda_.8} parent=1 // pred_region
      _
    $region37: #{_lambda_.8} parent=1 // pred_fallthru
      _
    %166 = vsyncpa [#allocation3], 1
    %167 = vsyncpa [#allocation5], 1

// kernel: _lambda_.10
$region0: #{_lambda_.10}
  #allocation0 [shape = 'u32[]', space=smem, size = 0x4, offset = 0x4, fixed_abs, tag = 'smem constant byte address 0x4 - core index']
  #allocation1 [shape = 'u32[72,128]{1,0:T(1,128)}', space=vmem, size = 0x9000, scoped, tag = 'internal scratch']
  #allocation2 [shape = 'f32[16,32]{1,0:T(8,128)}', space=vmem, size = 0x2000, scoped, tag = 'scratch operand']
  %s0 = inlined_call_operand.vmem [shape: bf16[16,32], index: 0, kind: input, shape index: {}]
  %s1 = inlined_call_operand.vmem [shape: bf16[32,32], index: 1, kind: input, shape index: {}]
  %s2 = inlined_call_operand.vmem [shape: f32[1,32], index: 2, kind: input, shape index: {}]
  %s3 = inlined_call_operand.vmem [shape: f32[16,32], index: 3, kind: input, shape index: {}]
  %s4 = inlined_call_operand.vmem [shape: f32[16,32], index: 4, kind: output, shape index: {}]
  %s5 = sld [smem:[#allocation0]]
  $region34: #{_lambda_.10} parent=0
    _
  %s7 = ssub.s32 1, %s5
  %s8 = scalar_select 0, %s7, %s5
  // Predicated region
  $region2: #{_lambda_.10} parent=0 // pred_check
    _
  $region3: #{_lambda_.10} parent=0 // pred_check_branch
    %10 = sbr.rel (0) target = $region5
  $region4: #{_lambda_.10} parent=0 // pred_region
    _
  $region5: #{_lambda_.10} parent=0 // pred_fallthru
    _
  // Predicated region
  $region6: #{_lambda_.10} parent=0 // pred_check
    _
  $region7: #{_lambda_.10} parent=0 // pred_check_branch
    %12 = sbr.rel (0) target = $region9
  $region8: #{_lambda_.10} parent=0 // pred_region
    _
  $region9: #{_lambda_.10} parent=0 // pred_fallthru
    _
  // Predicated region
  $region10: #{_lambda_.10} parent=0 // pred_check
    _
  $region11: #{_lambda_.10} parent=0 // pred_check_branch
    %14 = sbr.rel (0) target = $region13
  $region12: #{_lambda_.10} parent=0 // pred_region
    _
  $region13: #{_lambda_.10} parent=0 // pred_fallthru
    _
  // Predicated region
  $region14: #{_lambda_.10} parent=0 // pred_check
    _
  $region15: #{_lambda_.10} parent=0 // pred_check_branch
    %16 = sbr.rel (0) target = $region17
  $region16: #{_lambda_.10} parent=0 // pred_region
    _
  $region17: #{_lambda_.10} parent=0 // pred_fallthru
    _
  %p18 = scmp.eq.s32.totalorder 0, 0
  // Predicated region
  $region18: #{_lambda_.10} parent=0 // pred_check
    %p19 = pneg %p18
  $region19: #{_lambda_.10} parent=0 // pred_check_branch
    %21 = sbr.rel (%p19) target = $region21
  $region20: #{_lambda_.10} parent=0 // pred_region
    %vm22 = vcmask 261120
    %23 = vst.msk [vmem:[#allocation2] sm:$0xff] %vm22, 0.0
    %24 = vst.msk [vmem:[#allocation2 + $0x8] sm:$0xff] %vm22, 0.0
  $region21: #{_lambda_.10} parent=0 // pred_fallthru
    _
  %v25 = vld [vmem:[#allocation2] sm:$0xff]
  %v26 = vld [vmem:[#allocation2 + $0x8] sm:$0xff]
  %v27 = vld [vmem:[%s0] sm:$0xf]
  %v28 = vld [vmem:[%s0 + $0x4] sm:$0xf]
  %v29 = vld [vmem:[%s1] sm:$0xf]
  %v30 = vld [vmem:[%s1 + $0x4] sm:$0xf]
  %v31 = vld [vmem:[%s1 + $0x8] sm:$0xf]
  %v32 = vld [vmem:[%s1 + $0xc] sm:$0xf]
  %v35 = vunpack.c.l.b16 %v27
  %v36 = vunpack.c.l.b16 %v28
  %v37 = vpack.c.b16 %v36, %v35
  %v42 = vunpack.c.l.b16 %v29
  %v43 = vunpack.c.l.b16 %v30
  %v44 = vunpack.c.l.b16 %v31
  %v45 = vunpack.c.l.b16 %v32
  %v46 = vpack.c.b16 %v43, %v42
  %v47 = vpack.c.b16 %v45, %v44
  %vm50 = vcmask 261120
  %v52 = vsel %vm50, %v37, 0
  %54 = vmatpush.bf16.msra.mxu0 0
  %55 = vmatpush.bf16.msra.mxu0 0
  %56 = vmatpush.bf16.msra.mxu0 0
  %57 = vmatpush.bf16.msra.mxu0 0
  %58 = vmatpush.bf16.msra.mxu0 0
  %59 = vmatpush.bf16.msra.mxu0 0
  %60 = vmatpush.bf16.msra.mxu0 %v47
  %61 = vmatpush.bf16.msra.mxu0 %v46
  %62 = vmatmul.bf16.gmra.mxu0 %v52
  %v63 = vpop.f32.mrf.mxu0
  %v64 = vadd.f32 0.0, %v63
  %v65 = vpop.f32.mrf.mxu0
  %v66 = vadd.f32 0.0, %v65
  %67 = vdwg.mxu0
  %v68 = vadd.f32 %v25, %v64
  %v69 = vadd.f32 %v26, %v66
  %70 = vst.msk [vmem:[#allocation2] sm:$0xff] %vm50, %v68
  %71 = vst.msk [vmem:[#allocation2 + $0x8] sm:$0xff] %vm50, %v69
  // Predicated region
  $region22: #{_lambda_.10} parent=0 // pred_check
    %p72 = pneg %p18
  $region23: #{_lambda_.10} parent=0 // pred_check_branch
    %74 = sbr.rel (%p72) target = $region25
  $region24: #{_lambda_.10} parent=0 // pred_region
    %v75 = vld [vmem:[#allocation2] sm:$0xff]
    %v76 = vld [vmem:[#allocation2 + $0x8] sm:$0xff]
    %v77 = vld [vmem:[%s2] sm:$0x1]
    %v79 = vperm.slane %v77, 0
    %v81 = vadd.f32 %v75, %v79
    %v82 = vadd.f32 %v76, %v79
    %v83 = vld [vmem:[%s3] sm:$0xff]
    %v84 = vld [vmem:[%s3 + $0x8] sm:$0xff]
    %v85 = vadd.f32 %v81, %v83
    %v86 = vadd.f32 %v82, %v84
    %87 = vst.msk [vmem:[%s4] sm:$0xff] %vm50, %v85
    %88 = vst.msk [vmem:[%s4 + $0x8] sm:$0xff] %vm50, %v86
  $region25: #{_lambda_.10} parent=0 // pred_fallthru
    _
  // Predicated region
  $region26: #{_lambda_.10} parent=0 // pred_check
    _
  $region27: #{_lambda_.10} parent=0 // pred_check_branch
    %90 = sbr.rel (0) target = $region29
  $region28: #{_lambda_.10} parent=0 // pred_region
    _
  $region29: #{_lambda_.10} parent=0 // pred_fallthru
    _
  // Predicated region
  $region30: #{_lambda_.10} parent=0 // pred_check
    _
  $region31: #{_lambda_.10} parent=0 // pred_check_branch
    %92 = sbr.rel (0) target = $region33
  $region32: #{_lambda_.10} parent=0 // pred_region
    _
  $region33: #{_lambda_.10} parent=0 // pred_fallthru
    _

// kernel: _lambda_.9
$region0: #{_lambda_.9}
  #allocation0 [shape = 'u32[]', space=smem, size = 0x4, offset = 0x4, fixed_abs, tag = 'smem constant byte address 0x4 - core index']
  #allocation1 [shape = 'u32[72,128]{1,0:T(1,128)}', space=vmem, size = 0x9000, scoped, tag = 'internal scratch']
  %s0 = inlined_call_operand.vmem [shape: bf16[2,2,8,16], index: 0, kind: input, shape index: {}]
  %s1 = inlined_call_operand.vmem [shape: bf16[2,2,8,16], index: 1, kind: input, shape index: {}]
  %s2 = inlined_call_operand.vmem [shape: bf16[2,2,8,16], index: 2, kind: input, shape index: {}]
  %s3 = inlined_call_operand.vmem [shape: f32[8,8], index: 3, kind: input, shape index: {}]
  %s4 = inlined_call_operand.vmem [shape: bf16[2,2,8,16], index: 4, kind: output, shape index: {}]
  %s5 = sld [smem:[#allocation0]]
  $region49: #{_lambda_.9} parent=0
    _
  %s7 = ssub.s32 1, %s5
  %s8 = scalar_select 0, %s7, %s5
  loop: start=0, step=1, limit=6
  $region2: #{_lambda_.9} parent=0 // loop_pre_header
    _
  $region3: #{_lambda_.9} parent=0 // loop_header
    %s10 = sphi 0, %s14
    %p11 = scmp.ge.s32.totalorder %s10, 6
    %s17 = sphi 0, %s36
    %s18 = sphi 0, %s32
    %s19 = sphi 0, %s28
    %s20 = sphi 0, %s17
    %s21 = sphi 0, %s18
    %s22 = sphi 0, %s19
    %s23 = sphi 0, %s20
    %s24 = sphi 0, %s21
    %s25 = sphi 0, %s22
    %s43 = sphi 0, %s45
    %s46 = sphi 0, %s43
    %s47 = sphi 0, %s46
    %s63 = sphi 0, %s47
    %s71 = sphi 0, %s73
    %s74 = sphi 0, %s71
    %s75 = sphi 0, %s74
    %s91 = sphi 0, %s75
    %s99 = sphi 0, %s101
    %s102 = sphi 0, %s99
    %s103 = sphi 0, %s102
    %s119 = sphi 0, %s103
    %s125 = sphi 0, %s127
    %s128 = sphi 0, %s125
    %s129 = sphi 0, %s128
    %s145 = sphi 0, %s129
    %s155 = sphi 0, %s157
    %s158 = sphi 0, %s155
    %s159 = sphi 0, %s158
    %s175 = sphi 0, %s159
  $region4: #{_lambda_.9} parent=0 // loop_header_branch
    %13 = sbr.rel (%p11) target = $region8
  $region5: #{_lambda_.9} parent=0 // loop_body
    %s15 = ssub.s32 %s10, 1
    %s16 = ssub.s32 %s10, 2
    %s26 = sadd.s32 1, %s19
    %p27 = scmp.ge.s32.totalorder %s26, 1
    %s28 = scalar_select %p27, 0, %s26
    %s29 = sadd.s32 1, %s18
    %s30 = scalar_select %p27, %s29, %s18
    %p31 = scmp.ge.s32.totalorder %s30, 2
    %s32 = scalar_select %p31, 0, %s30
    %s33 = sadd.s32 1, %s17
    %s34 = scalar_select %p31, %s33, %s17
    %p35 = scmp.ge.s32.totalorder %s34, 2
    %s36 = scalar_select %p35, 0, %s34
    %s37 = ssub.s32 %s17, %s36
    %s38 = ssub.s32 %s18, %s32
    %s39 = sor.u32 %s37, %s38
    %s40 = ssub.s32 %s19, %s28
    %s41 = sor.u32 %s39, %s40
    %p42 = scmp.eq.s32.totalorder %s41, 0
    %s44 = sadd.s32 %s43, 1
    %s45 = scalar_select %p42, %s43, %s44
    %p48 = pneg %p42
    %p49 = scmp.eq.s32.totalorder %s10, 3
    %p50 = por %p48, %p49
    %p51 = scmp.ne.s32.totalorder %s43, %s46
    %p52 = scmp.eq.s32.totalorder %s10, 0
    %p53 = por %p51, %p52
    %p54 = scmp.ne.s32.totalorder %s43, %s46
    %p55 = scmp.eq.s32.totalorder %s15, 3
    %p56 = por %p54, %p55
    %p57 = scmp.ne.s32.totalorder %s46, %s47
    %p58 = scmp.eq.s32.totalorder %s15, 0
    %p59 = por %p57, %p58
    %p60 = scmp.ne.s32.totalorder %s46, %s47
    %p61 = scmp.eq.s32.totalorder %s16, 3
    %p62 = por %p60, %p61
    %p64 = scmp.ne.s32.totalorder %s47, %s63
    %p65 = scmp.eq.s32.totalorder %s16, 0
    %p66 = por %p64, %p65
    %s67 = ssub.s32 %s17, %s36
    %s68 = ssub.s32 %s18, %s32
    %s69 = sor.u32 %s67, %s68
    %p70 = scmp.eq.s32.totalorder %s69, 0
    %s72 = sadd.s32 %s71, 1
    %s73 = scalar_select %p70, %s71, %s72
    %p76 = pneg %p70
    %p77 = scmp.eq.s32.totalorder %s10, 3
    %p78 = por %p76, %p77
    %p79 = scmp.ne.s32.totalorder %s71, %s74
    %p80 = scmp.eq.s32.totalorder %s10, 0
    %p81 = por %p79, %p80
    %p82 = scmp.ne.s32.totalorder %s71, %s74
    %p83 = scmp.eq.s32.totalorder %s15, 3
    %p84 = por %p82, %p83
    %p85 = scmp.ne.s32.totalorder %s74, %s75
    %p86 = scmp.eq.s32.totalorder %s15, 0
    %p87 = por %p85, %p86
    %p88 = scmp.ne.s32.totalorder %s74, %s75
    %p89 = scmp.eq.s32.totalorder %s16, 3
    %p90 = por %p88, %p89
    %p92 = scmp.ne.s32.totalorder %s75, %s91
    %p93 = scmp.eq.s32.totalorder %s16, 0
    %p94 = por %p92, %p93
    %s95 = ssub.s32 %s17, %s36
    %s96 = ssub.s32 %s18, %s32
    %s97 = sor.u32 %s95, %s96
    %p98 = scmp.eq.s32.totalorder %s97, 0
    %s100 = sadd.s32 %s99, 1
    %s101 = scalar_select %p98, %s99, %s100
    %p104 = pneg %p98
    %p105 = scmp.eq.s32.totalorder %s10, 3
    %p106 = por %p104, %p105
    %p107 = scmp.ne.s32.totalorder %s99, %s102
    %p108 = scmp.eq.s32.totalorder %s10, 0
    %p109 = por %p107, %p108
    %p110 = scmp.ne.s32.totalorder %s99, %s102
    %p111 = scmp.eq.s32.totalorder %s15, 3
    %p112 = por %p110, %p111
    %p113 = scmp.ne.s32.totalorder %s102, %s103
    %p114 = scmp.eq.s32.totalorder %s15, 0
    %p115 = por %p113, %p114
    %p116 = scmp.ne.s32.totalorder %s102, %s103
    %p117 = scmp.eq.s32.totalorder %s16, 3
    %p118 = por %p116, %p117
    %p120 = scmp.ne.s32.totalorder %s103, %s119
    %p121 = scmp.eq.s32.totalorder %s16, 0
    %p122 = por %p120, %p121
    %s123 = ssub.s32 %s19, %s28
    %p124 = scmp.eq.s32.totalorder %s123, 0
    %s126 = sadd.s32 %s125, 1
    %s127 = scalar_select %p124, %s125, %s126
    %p130 = pneg %p124
    %p131 = scmp.eq.s32.totalorder %s10, 3
    %p132 = por %p130, %p131
    %p133 = scmp.ne.s32.totalorder %s125, %s128
    %p134 = scmp.eq.s32.totalorder %s10, 0
    %p135 = por %p133, %p134
    %p136 = scmp.ne.s32.totalorder %s125, %s128
    %p137 = scmp.eq.s32.totalorder %s15, 3
    %p138 = por %p136, %p137
    %p139 = scmp.ne.s32.totalorder %s128, %s129
    %p140 = scmp.eq.s32.totalorder %s15, 0
    %p141 = por %p139, %p140
    %p142 = scmp.ne.s32.totalorder %s128, %s129
    %p143 = scmp.eq.s32.totalorder %s16, 3
    %p144 = por %p142, %p143
    %p146 = scmp.ne.s32.totalorder %s129, %s145
    %p147 = scmp.eq.s32.totalorder %s16, 0
    %p148 = por %p146, %p147
    %s149 = ssub.s32 %s17, %s36
    %s150 = ssub.s32 %s18, %s32
    %s151 = sor.u32 %s149, %s150
    %s152 = ssub.s32 %s19, %s28
    %s153 = sor.u32 %s151, %s152
    %p154 = scmp.eq.s32.totalorder %s153, 0
    %s156 = sadd.s32 %s155, 1
    %s157 = scalar_select %p154, %s155, %s156
    %p160 = pneg %p154
    %p161 = scmp.eq.s32.totalorder %s10, 3
    %p162 = por %p160, %p161
    %p163 = scmp.ne.s32.totalorder %s155, %s158
    %p164 = scmp.eq.s32.totalorder %s10, 0
    %p165 = por %p163, %p164
    %p166 = scmp.ne.s32.totalorder %s155, %s158
    %p167 = scmp.eq.s32.totalorder %s15, 3
    %p168 = por %p166, %p167
    %p169 = scmp.ne.s32.totalorder %s158, %s159
    %p170 = scmp.eq.s32.totalorder %s15, 0
    %p171 = por %p169, %p170
    %p172 = scmp.ne.s32.totalorder %s158, %s159
    %p173 = scmp.eq.s32.totalorder %s16, 3
    %p174 = por %p172, %p173
    %p176 = scmp.ne.s32.totalorder %s159, %s175
    %p177 = scmp.eq.s32.totalorder %s16, 0
    %p178 = por %p176, %p177
    %p179 = scmp.le.s32.totalorder 1, %s10
    %p180 = scmp.lt.s32.totalorder %s10, 5
    %p181 = pnand %p179, %p180
    %p182 = pneg %p181
    // Predicated region
    $region9: #{_lambda_.9} parent=5 // pred_check
      _
    $region10: #{_lambda_.9} parent=5 // pred_check_branch
      %184 = sbr.rel (%p181) target = $region12
    $region11: #{_lambda_.9} parent=5 // pred_region
      %s185 = ssub.s32 %s10, 1
      // Predicated region
      $region13: #{_lambda_.9} parent=11 // pred_check
        %p186 = pneg %p141
      $region14: #{_lambda_.9} parent=11 // pred_check_branch
        %188 = sbr.rel (%p186) target = $region16
      $region15: #{_lambda_.9} parent=11 // pred_region
        %p189 = scmp.lt.s32.totalorder %s22, 0
        %s190 = scalar_select %p189, %s22, 0
        %s191 = smul.addr %s190, 8
        %s192 = scalar_lea.vmem %s3, %s191
      $region16: #{_lambda_.9} parent=11 // pred_fallthru
        _
    $region12: #{_lambda_.9} parent=5 // pred_fallthru
      _
    %p193 = scmp.lt.s32.totalorder %s10, 4
    // Predicated region
    $region17: #{_lambda_.9} parent=5 // pred_check
      %p194 = pneg %p193
    $region18: #{_lambda_.9} parent=5 // pred_check_branch
      %196 = sbr.rel (%p194) target = $region20
    $region19: #{_lambda_.9} parent=5 // pred_region
      // Predicated region
      $region21: #{_lambda_.9} parent=19 // pred_check
        %p197 = pneg %p53
      $region22: #{_lambda_.9} parent=19 // pred_check_branch
        %199 = sbr.rel (%p197) target = $region24
      $region23: #{_lambda_.9} parent=19 // pred_region
        %p200 = scmp.lt.s32.totalorder %s17, 1
        %s201 = scalar_select %p200, %s17, 1
        %p202 = scmp.lt.s32.totalorder %s18, 1
        %s203 = scalar_select %p202, %s18, 1
        %p204 = scmp.lt.s32.totalorder %s19, 0
        %s205 = scalar_select %p204, %s19, 0
        %s206 = sadd.s32 %s205, %s203
        %s207 = smul.addr %s201, 2
        %s208 = sadd.s32 %s206, %s207
        %s209 = smul.addr %s208, 4
        %s210 = scalar_lea.vmem %s0, %s209
      $region24: #{_lambda_.9} parent=19 // pred_fallthru
        _
      // Predicated region
      $region25: #{_lambda_.9} parent=19 // pred_check
        %p211 = pneg %p81
      $region26: #{_lambda_.9} parent=19 // pred_check_branch
        %213 = sbr.rel (%p211) target = $region28
      $region27: #{_lambda_.9} parent=19 // pred_region
        %p214 = scmp.lt.s32.totalorder %s17, 1
        %s215 = scalar_select %p214, %s17, 1
        %p216 = scmp.lt.s32.totalorder %s18, 1
        %s217 = scalar_select %p216, %s18, 1
        %s218 = smul.addr %s215, 2
        %s219 = sadd.s32 %s217, %s218
        %s220 = smul.addr %s219, 4
        %s221 = scalar_lea.vmem %s1, %s220
      $region28: #{_lambda_.9} parent=19 // pred_fallthru
        _
      // Predicated region
      $region29: #{_lambda_.9} parent=19 // pred_check
        %p222 = pneg %p109
      $region30: #{_lambda_.9} parent=19 // pred_check_branch
        %224 = sbr.rel (%p222) target = $region32
      $region31: #{_lambda_.9} parent=19 // pred_region
        %p225 = scmp.lt.s32.totalorder %s17, 1
        %s226 = scalar_select %p225, %s17, 1
        %p227 = scmp.lt.s32.totalorder %s18, 1
        %s228 = scalar_select %p227, %s18, 1
        %s229 = smul.addr %s226, 2
        %s230 = sadd.s32 %s228, %s229
        %s231 = smul.addr %s230, 4
        %s232 = scalar_lea.vmem %s2, %s231
      $region32: #{_lambda_.9} parent=19 // pred_fallthru
        _
    $region20: #{_lambda_.9} parent=5 // pred_fallthru
      _
    %p233 = scmp.le.s32.totalorder 1, %s10
    %p234 = scmp.lt.s32.totalorder %s10, 5
    %p235 = pnand %p233, %p234
    %p236 = pneg %p235
    // Predicated region
    $region33: #{_lambda_.9} parent=5 // pred_check
      _
    $region34: #{_lambda_.9} parent=5 // pred_check_branch
      %238 = sbr.rel (%p235) target = $region36
    $region35: #{_lambda_.9} parent=5 // pred_region
      %s239 = ssub.s32 %s10, 1
      %p240 = scmp.lt.s32.totalorder %s20, 1
      %s241 = scalar_select %p240, %s20, 1
      %p242 = scmp.lt.s32.totalorder %s21, 1
      %s243 = scalar_select %p242, %s21, 1
      %p244 = scmp.lt.s32.totalorder %s22, 0
      %s245 = scalar_select %p244, %s22, 0
      %s246 = sadd.s32 %s245, %s243
      %s247 = smul.addr %s241, 2
      %s248 = sadd.s32 %s246, %s247
      %s249 = smul.addr %s248, 4
      %s250 = scalar_lea.vmem %s0, %s249
      %p251 = pneg %p59
      %p252 = pneg %p56
      %p253 = scmp.lt.s32.totalorder %s20, 1
      %s254 = scalar_select %p253, %s20, 1
      %p255 = scmp.lt.s32.totalorder %s21, 1
      %s256 = scalar_select %p255, %s21, 1
      %s257 = smul.addr %s254, 2
      %s258 = sadd.s32 %s256, %s257
      %s259 = smul.addr %s258, 4
      %s260 = scalar_lea.vmem %s1, %s259
      %p261 = pneg %p87
      %p262 = pneg %p84
      %p263 = scmp.lt.s32.totalorder %s20, 1
      %s264 = scalar_select %p263, %s20, 1
      %p265 = scmp.lt.s32.totalorder %s21, 1
      %s266 = scalar_select %p265, %s21, 1
      %s267 = smul.addr %s264, 2
      %s268 = sadd.s32 %s266, %s267
      %s269 = smul.addr %s268, 4
      %s270 = scalar_lea.vmem %s2, %s269
      %p271 = pneg %p115
      %p272 = pneg %p112
      %p273 = scmp.lt.s32.totalorder %s22, 0
      %s274 = scalar_select %p273, %s22, 0
      %s275 = smul.addr %s274, 8
      %s276 = scalar_lea.vmem %s3, %s275
      %p277 = pneg %p141
      %p278 = pneg %p138
      %p279 = pneg %p171
      %p280 = pneg %p168
      %p281 = scmp.lt.s32.totalorder %s20, 1
      %s282 = scalar_select %p281, %s20, 1
      %p283 = scmp.lt.s32.totalorder %s21, 1
      %s284 = scalar_select %p283, %s21, 1
      %p285 = scmp.lt.s32.totalorder %s22, 0
      %s286 = scalar_select %p285, %s22, 0
      %s287 = sadd.s32 %s286, %s284
      %s288 = smul.addr %s282, 2
      %s289 = sadd.s32 %s287, %s288
      %s290 = smul.addr %s289, 4
      %s291 = scalar_lea.vmem %s4, %s290
      %p292 = scmp.lt.s32.totalorder %s20, 1
      %s293 = scalar_select %p292, %s20, 1
      %p294 = scmp.lt.s32.totalorder %s21, 1
      %s295 = scalar_select %p294, %s21, 1
      %p296 = scmp.lt.s32.totalorder %s22, 0
      %s297 = scalar_select %p296, %s22, 0
      %s298 = sadd.s32 %s297, %s295
      %s299 = smul.addr %s293, 2
      %s300 = sadd.s32 %s298, %s299
      %s301 = smul.addr %s300, 4
      %s302 = scalar_lea.vmem %s0, %s301
      %p303 = scmp.lt.s32.totalorder %s20, 1
      %s304 = scalar_select %p303, %s20, 1
      %p305 = scmp.lt.s32.totalorder %s21, 1
      %s306 = scalar_select %p305, %s21, 1
      %s307 = smul.addr %s304, 2
      %s308 = sadd.s32 %s306, %s307
      %s309 = smul.addr %s308, 4
      %s310 = scalar_lea.vmem %s1, %s309
      %p311 = scmp.lt.s32.totalorder %s20, 1
      %s312 = scalar_select %p311, %s20, 1
      %p313 = scmp.lt.s32.totalorder %s21, 1
      %s314 = scalar_select %p313, %s21, 1
      %s315 = smul.addr %s312, 2
      %s316 = sadd.s32 %s314, %s315
      %s317 = smul.addr %s316, 4
      %s318 = scalar_lea.vmem %s2, %s317
      %p319 = scmp.lt.s32.totalorder %s22, 0
      %s320 = scalar_select %p319, %s22, 0
      %s321 = smul.addr %s320, 8
      %s322 = scalar_lea.vmem %s3, %s321
      %p323 = scmp.lt.s32.totalorder %s20, 1
      %s324 = scalar_select %p323, %s20, 1
      %p325 = scmp.lt.s32.totalorder %s21, 1
      %s326 = scalar_select %p325, %s21, 1
      %p327 = scmp.lt.s32.totalorder %s22, 0
      %s328 = scalar_select %p327, %s22, 0
      %s329 = sadd.s32 %s328, %s326
      %s330 = smul.addr %s324, 2
      %s331 = sadd.s32 %s329, %s330
      %s332 = smul.addr %s331, 4
      %s333 = scalar_lea.vmem %s4, %s332
      %v335 = vld [vmem:[%s302] sm:$0xf]
      %v336 = vld [vmem:[%s310] sm:$0xf]
      %vm337 = vcmask 130048
      %v339 = vsel %vm337, %v335, 0
      %v342 = vsel %vm337, %v336, 0
      %344 = vmatpush.bf16.xpose.msra.mxu0 0
      %345 = vmatpush.bf16.xpose.msra.mxu0 0
      %346 = vmatpush.bf16.xpose.msra.mxu0 0
      %347 = vmatpush.bf16.xpose.msra.mxu0 0
      %348 = vmatpush.bf16.xpose.msra.mxu0 0
      %349 = vmatpush.bf16.xpose.msra.mxu0 0
      %350 = vmatpush.bf16.xpose.msra.mxu0 0
      %351 = vmatpush.bf16.xpose.msra.mxu0 %v342
      %352 = vmatmul.bf16.gmra.mxu0 %v339
      %v353 = vpop.f32.mrf.mxu0
      %v354 = vadd.f32 0.0, %v353
      %v355 = vpop.f32.mrf.mxu0
      %356 = vdwg.mxu0
      %v357 = vmul.f32 %v354, 0.25
      %v358 = vld [vmem:[%s322] sm:$0xff]
      %v359 = vadd.f32 %v357, %v358
      %vm360 = vcmask 64512
      %v361 = vsel %vm360, %v359, -inf
      %362 = vmax.xlane.f32.xlu0 %v361
      %v363 = vpop.xlane.xlu0 %362
      %v364 = vsub.f32 %v359, %v363
      %v365 = vmul.f32 %v364, 1.442695
      %v366 = vpow.pop %v365
      %v367 = vsel %vm360, %v366, 0.0
      %368 = vadd.xlane.f32.xlu0 %v367
      %v369 = vpop.xlane.xlu0 %368
      %v370 = vrcp.pop %v369
      %v371 = vmul.f32 %v366, %v370
      %v372 = vpack.c.bf16 %v371, %v371
      %v373 = vld [vmem:[%s318] sm:$0xf]
      %v375 = vsel %vm360, %v372, 0
      %vm377 = vcmask 1043456
      %v379 = vsel %vm377, %v373, 0
      %381 = vmatpush.bf16.msra.mxu0 0
      %382 = vmatpush.bf16.msra.mxu0 0
      %383 = vmatpush.bf16.msra.mxu0 0
      %384 = vmatpush.bf16.msra.mxu0 0
      %385 = vmatpush.bf16.msra.mxu0 0
      %386 = vmatpush.bf16.msra.mxu0 0
      %387 = vmatpush.bf16.msra.mxu0 0
      %388 = vmatpush.bf16.msra.mxu0 %v379
      %389 = vmatmul.bf16.gmra.mxu0 %v375
      %v390 = vpop.f32.mrf.mxu0
      %v391 = vadd.f32 0.0, %v390
      %v392 = vpop.f32.mrf.mxu0
      %393 = vdwg.mxu0
      %v394 = vpack.c.bf16 %v391, %v391
      %vm395 = vcmask 125952
      %396 = vst.msk [vmem:[%s333] sm:$0xf] %vm395, %v394
      %p397 = scmp.lt.s32.totalorder %s20, 1
      %s398 = scalar_select %p397, %s20, 1
      %p399 = scmp.lt.s32.totalorder %s21, 1
      %s400 = scalar_select %p399, %s21, 1
      %p401 = scmp.lt.s32.totalorder %s22, 0
      %s402 = scalar_select %p401, %s22, 0
      %s403 = sadd.s32 %s402, %s400
      %s404 = smul.addr %s398, 2
      %s405 = sadd.s32 %s403, %s404
      %s406 = smul.addr %s405, 4
      %s407 = scalar_lea.vmem %s4, %s406
      // Predicated region
      $region37: #{_lambda_.9} parent=35 // pred_check
        %p408 = pneg %p168
      $region38: #{_lambda_.9} parent=35 // pred_check_branch
        %410 = sbr.rel (%p408) target = $region40
      $region39: #{_lambda_.9} parent=35 // pred_region
        _
      $region40: #{_lambda_.9} parent=35 // pred_fallthru
        _
    $region36: #{_lambda_.9} parent=5 // pred_fallthru
      _
    %p411 = scmp.le.s32.totalorder 2, %s10
    // Predicated region
    $region41: #{_lambda_.9} parent=5 // pred_check
      %p412 = pneg %p411
    $region42: #{_lambda_.9} parent=5 // pred_check_branch
      %414 = sbr.rel (%p412) target = $region44
    $region43: #{_lambda_.9} parent=5 // pred_region
      %s415 = ssub.s32 %s10, 2
      // Predicated region
      $region45: #{_lambda_.9} parent=43 // pred_check
        %p416 = pneg %p174
      $region46: #{_lambda_.9} parent=43 // pred_check_branch
        %418 = sbr.rel (%p416) target = $region48
      $region47: #{_lambda_.9} parent=43 // pred_region
        %p419 = scmp.lt.s32.totalorder %s23, 1
        %s420 = scalar_select %p419, %s23, 1
        %p421 = scmp.lt.s32.totalorder %s24, 1
        %s422 = scalar_select %p421, %s24, 1
        %p423 = scmp.lt.s32.totalorder %s25, 0
        %s424 = scalar_select %p423, %s25, 0
        %s425 = sadd.s32 %s424, %s422
        %s426 = smul.addr %s420, 2
        %s427 = sadd.s32 %s425, %s426
        %s428 = smul.addr %s427, 4
        %s429 = scalar_lea.vmem %s4, %s428
      $region48: #{_lambda_.9} parent=43 // pred_fallthru
        _
    $region44: #{_lambda_.9} parent=5 // pred_fallthru
      _
  $region6: #{_lambda_.9} parent=0 // loop_footer
    %s14 = sadd.s32 1, %s10
  $region7: #{_lambda_.9} parent=0 // loop_footer_branch
    %9 = sbr.rel target = $region3
  $region8: #{_lambda_.9} parent=0 // loop_exit
    _

// kernel: _lambda_.12
$region0: #{_lambda_.12}
  #allocation0 [shape = 'u32[]', space=smem, size = 0x4, offset = 0x4, fixed_abs, tag = 'smem constant byte address 0x4 - core index']
  #allocation1 [shape = 'u32[72,128]{1,0:T(1,128)}', space=vmem, size = 0x9000, scoped, tag = 'internal scratch']
  %s0 = inlined_call_operand.vmem [shape: f32[16,32], index: 0, kind: input, shape index: {}]
  %s1 = inlined_call_operand.vmem [shape: f32[1,32], index: 1, kind: input, shape index: {}]
  %s2 = inlined_call_operand.vmem [shape: f32[1,32], index: 2, kind: input, shape index: {}]
  %s3 = inlined_call_operand.vmem [shape: bf16[32,96], index: 3, kind: input, shape index: {}]
  %s4 = inlined_call_operand.vmem [shape: f32[1,96], index: 4, kind: input, shape index: {}]
  %s5 = inlined_call_operand.vmem [shape: bf16[16,96], index: 5, kind: output, shape index: {}]
  %s6 = sld [smem:[#allocation0]]
  $region30: #{_lambda_.12} parent=0
    _
  %s8 = ssub.s32 1, %s6
  %s9 = scalar_select 0, %s8, %s6
  // Predicated region
  $region2: #{_lambda_.12} parent=0 // pred_check
    _
  $region3: #{_lambda_.12} parent=0 // pred_check_branch
    %11 = sbr.rel (0) target = $region5
  $region4: #{_lambda_.12} parent=0 // pred_region
    _
  $region5: #{_lambda_.12} parent=0 // pred_fallthru
    _
  // Predicated region
  $region6: #{_lambda_.12} parent=0 // pred_check
    _
  $region7: #{_lambda_.12} parent=0 // pred_check_branch
    %13 = sbr.rel (0) target = $region9
  $region8: #{_lambda_.12} parent=0 // pred_region
    _
  $region9: #{_lambda_.12} parent=0 // pred_fallthru
    _
  // Predicated region
  $region10: #{_lambda_.12} parent=0 // pred_check
    _
  $region11: #{_lambda_.12} parent=0 // pred_check_branch
    %15 = sbr.rel (0) target = $region13
  $region12: #{_lambda_.12} parent=0 // pred_region
    _
  $region13: #{_lambda_.12} parent=0 // pred_fallthru
    _
  // Predicated region
  $region14: #{_lambda_.12} parent=0 // pred_check
    _
  $region15: #{_lambda_.12} parent=0 // pred_check_branch
    %17 = sbr.rel (0) target = $region17
  $region16: #{_lambda_.12} parent=0 // pred_region
    _
  $region17: #{_lambda_.12} parent=0 // pred_fallthru
    _
  // Predicated region
  $region18: #{_lambda_.12} parent=0 // pred_check
    _
  $region19: #{_lambda_.12} parent=0 // pred_check_branch
    %19 = sbr.rel (0) target = $region21
  $region20: #{_lambda_.12} parent=0 // pred_region
    _
  $region21: #{_lambda_.12} parent=0 // pred_fallthru
    _
  %v21 = vld [vmem:[%s0] sm:$0xff]
  %v22 = vld [vmem:[%s0 + $0x8] sm:$0xff]
  %v23 = vld [vmem:[%s1] sm:$0x1]
  %v24 = vld [vmem:[%s2] sm:$0x1]
  %vm25 = vcmask 261120
  %v26 = vsel %vm25, %v21, 0.0
  %27 = vadd.xlane.f32.xlu0 %v26
  %v28 = vpop.xlane.xlu0 %27
  %v29 = vsel %vm25, %v22, 0.0
  %30 = vadd.xlane.f32.xlu0 %v29
  %v31 = vpop.xlane.xlu0 %30
  %v32 = vrcp.pop 32.0
  %v33 = vmul.f32 32.0, %v32
  %v34 = vsub.f32 1.0, %v33
  %v35 = vmul.f32 %v32, %v34
  %v36 = vadd.f32 %v32, %v35
  %vm37 = vweird.f32 %v32
  %v38 = vsel %vm37, %v32, %v36
  %v39 = vmul.f32 %v28, %v38
  %v40 = vmul.f32 %v31, %v38
  %v41 = vsub.f32 %v21, %v39
  %v42 = vsub.f32 %v22, %v40
  %v43 = vmul.f32 %v41, %v41
  %v44 = vmul.f32 %v42, %v42
  %v45 = vsel %vm25, %v43, 0.0
  %46 = vadd.xlane.f32.xlu0 %v45
  %v47 = vpop.xlane.xlu0 %46
  %v48 = vsel %vm25, %v44, 0.0
  %49 = vadd.xlane.f32.xlu0 %v48
  %v50 = vpop.xlane.xlu0 %49
  %v51 = vmul.f32 %v47, %v38
  %v52 = vmul.f32 %v50, %v38
  %v53 = vadd.f32 %v51, 1e-05
  %v54 = vadd.f32 %v52, 1e-05
  %v55 = vrsqrt.pop %v53
  %v56 = vmul.f32 %v55, %v53
  %v57 = vmul.f32 %v56, %v55
  %v58 = vmul.f32 0.5, %v57
  %v59 = vsub.f32 1.5, %v58
  %v60 = vmul.f32 %v55, %v59
  %vm61 = vweird.f32 %v53
  %vm62 = vweird.f32 %v55
  %vm63 = vmor %vm61, %vm62
  %v64 = vsel %vm63, %v55, %v60
  %v65 = vrsqrt.pop %v54
  %v66 = vmul.f32 %v65, %v54
  %v67 = vmul.f32 %v66, %v65
  %v68 = vmul.f32 0.5, %v67
  %v69 = vsub.f32 1.5, %v68
  %v70 = vmul.f32 %v65, %v69
  %vm71 = vweird.f32 %v54
  %vm72 = vweird.f32 %v65
  %vm73 = vmor %vm71, %vm72
  %v74 = vsel %vm73, %v65, %v70
  %v75 = vmul.f32 %v41, %v64
  %v76 = vmul.f32 %v42, %v74
  %v78 = vperm.slane %v23, 0
  %v80 = vmul.f32 %v75, %v78
  %v81 = vmul.f32 %v76, %v78
  %v83 = vperm.slane %v24, 0
  %v85 = vadd.f32 %v80, %v83
  %v86 = vadd.f32 %v81, %v83
  %v87 = vpack.c.bf16 %v86, %v85
  %v88 = vld [vmem:[%s3] sm:$0xf]
  %v89 = vld [vmem:[%s3 + $0x4] sm:$0xf]
  %v90 = vld [vmem:[%s3 + $0x8] sm:$0xf]
  %v91 = vld [vmem:[%s3 + $0xc] sm:$0xf]
  %v92 = vld [vmem:[%s4] sm:$0x1]
  %v94 = vperm.slane %v92, 0
  %v100 = vunpack.c.l.b16 %v88
  %v101 = vunpack.c.l.b16 %v89
  %v102 = vunpack.c.l.b16 %v90
  %v103 = vunpack.c.l.b16 %v91
  %v104 = vpack.c.b16 %v101, %v100
  %v105 = vpack.c.b16 %v103, %v102
  %v109 = vsel %vm25, %v87, 0
  %111 = vmatpush.bf16.msra.mxu0 0
  %112 = vmatpush.bf16.msra.mxu0 0
  %113 = vmatpush.bf16.msra.mxu0 0
  %114 = vmatpush.bf16.msra.mxu0 0
  %115 = vmatpush.bf16.msra.mxu0 0
  %116 = vmatpush.bf16.msra.mxu0 0
  %117 = vmatpush.bf16.msra.mxu0 %v105
  %118 = vmatpush.bf16.msra.mxu0 %v104
  %119 = vmatmul.bf16.gmra.mxu0 %v109
  %v120 = vpop.f32.mrf.mxu0
  %v121 = vadd.f32 %v94, %v120
  %v122 = vpop.f32.mrf.mxu0
  %v123 = vadd.f32 %v94, %v122
  %124 = vdwg.mxu0
  %v125 = vpack.c.bf16 %v121, %v121
  %v126 = vpack.c.bf16 %v123, %v123
  %vm127 = vcmask 781312
  %128 = vst.msk [vmem:[%s5] sm:$0xf] %vm127, %v125
  %129 = vst.msk [vmem:[%s5 + $0x4] sm:$0xf] %vm127, %v126
  // Predicated region
  $region22: #{_lambda_.12} parent=0 // pred_check
    _
  $region23: #{_lambda_.12} parent=0 // pred_check_branch
    %131 = sbr.rel (0) target = $region25
  $region24: #{_lambda_.12} parent=0 // pred_region
    _
  $region25: #{_lambda_.12} parent=0 // pred_fallthru
    _
  // Predicated region
  $region26: #{_lambda_.12} parent=0 // pred_check
    _
  $region27: #{_lambda_.12} parent=0 // pred_check_branch
    %133 = sbr.rel (0) target = $region29
  $region28: #{_lambda_.12} parent=0 // pred_region
    _
  $region29: #{_lambda_.12} parent=0 // pred_fallthru
    _

// kernel: _lambda_.11
$region0: #{_lambda_.11}
  #allocation0 [shape = 'u32[]', space=smem, size = 0x4, offset = 0x4, fixed_abs, tag = 'smem constant byte address 0x4 - core index']
  #allocation1 [shape = 'u32[72,128]{1,0:T(1,128)}', space=vmem, size = 0x9000, scoped, tag = 'internal scratch']
  %s0 = inlined_call_operand.vmem [shape: f32[16,32], index: 0, kind: input, shape index: {}]
  %s1 = inlined_call_operand.vmem [shape: f32[1,32], index: 1, kind: input, shape index: {}]
  %s2 = inlined_call_operand.vmem [shape: f32[1,32], index: 2, kind: input, shape index: {}]
  %s3 = inlined_call_operand.vmem [shape: bf16[32,128], index: 3, kind: input, shape index: {}]
  %s4 = inlined_call_operand.vmem [shape: f32[1,128], index: 4, kind: input, shape index: {}]
  %s5 = inlined_call_operand.vmem [shape: bf16[128,32], index: 5, kind: input, shape index: {}]
  %s6 = inlined_call_operand.vmem [shape: f32[1,32], index: 6, kind: input, shape index: {}]
  %s7 = inlined_call_operand.vmem [shape: f32[16,32], index: 7, kind: output, shape index: {}]
  %s8 = sld [smem:[#allocation0]]
  $region38: #{_lambda_.11} parent=0
    _
  %s10 = ssub.s32 1, %s8
  %s11 = scalar_select 0, %s10, %s8
  // Predicated region
  $region2: #{_lambda_.11} parent=0 // pred_check
    _
  $region3: #{_lambda_.11} parent=0 // pred_check_branch
    %13 = sbr.rel (0) target = $region5
  $region4: #{_lambda_.11} parent=0 // pred_region
    _
  $region5: #{_lambda_.11} parent=0 // pred_fallthru
    _
  // Predicated region
  $region6: #{_lambda_.11} parent=0 // pred_check
    _
  $region7: #{_lambda_.11} parent=0 // pred_check_branch
    %15 = sbr.rel (0) target = $region9
  $region8: #{_lambda_.11} parent=0 // pred_region
    _
  $region9: #{_lambda_.11} parent=0 // pred_fallthru
    _
  // Predicated region
  $region10: #{_lambda_.11} parent=0 // pred_check
    _
  $region11: #{_lambda_.11} parent=0 // pred_check_branch
    %17 = sbr.rel (0) target = $region13
  $region12: #{_lambda_.11} parent=0 // pred_region
    _
  $region13: #{_lambda_.11} parent=0 // pred_fallthru
    _
  // Predicated region
  $region14: #{_lambda_.11} parent=0 // pred_check
    _
  $region15: #{_lambda_.11} parent=0 // pred_check_branch
    %19 = sbr.rel (0) target = $region17
  $region16: #{_lambda_.11} parent=0 // pred_region
    _
  $region17: #{_lambda_.11} parent=0 // pred_fallthru
    _
  // Predicated region
  $region18: #{_lambda_.11} parent=0 // pred_check
    _
  $region19: #{_lambda_.11} parent=0 // pred_check_branch
    %21 = sbr.rel (0) target = $region21
  $region20: #{_lambda_.11} parent=0 // pred_region
    _
  $region21: #{_lambda_.11} parent=0 // pred_fallthru
    _
  // Predicated region
  $region22: #{_lambda_.11} parent=0 // pred_check
    _
  $region23: #{_lambda_.11} parent=0 // pred_check_branch
    %23 = sbr.rel (0) target = $region25
  $region24: #{_lambda_.11} parent=0 // pred_region
    _
  $region25: #{_lambda_.11} parent=0 // pred_fallthru
    _
  // Predicated region
  $region26: #{_lambda_.11} parent=0 // pred_check
    _
  $region27: #{_lambda_.11} parent=0 // pred_check_branch
    %25 = sbr.rel (0) target = $region29
  $region28: #{_lambda_.11} parent=0 // pred_region
    _
  $region29: #{_lambda_.11} parent=0 // pred_fallthru
    _
  %v27 = vld [vmem:[%s0] sm:$0xff]
  %v28 = vld [vmem:[%s0 + $0x8] sm:$0xff]
  %v29 = vld [vmem:[%s1] sm:$0x1]
  %v30 = vld [vmem:[%s2] sm:$0x1]
  %vm31 = vcmask 261120
  %v32 = vsel %vm31, %v27, 0.0
  %33 = vadd.xlane.f32.xlu0 %v32
  %v34 = vpop.xlane.xlu0 %33
  %v35 = vsel %vm31, %v28, 0.0
  %36 = vadd.xlane.f32.xlu0 %v35
  %v37 = vpop.xlane.xlu0 %36
  %v38 = vrcp.pop 32.0
  %v39 = vmul.f32 32.0, %v38
  %v40 = vsub.f32 1.0, %v39
  %v41 = vmul.f32 %v38, %v40
  %v42 = vadd.f32 %v38, %v41
  %vm43 = vweird.f32 %v38
  %v44 = vsel %vm43, %v38, %v42
  %v45 = vmul.f32 %v34, %v44
  %v46 = vmul.f32 %v37, %v44
  %v47 = vsub.f32 %v27, %v45
  %v48 = vsub.f32 %v28, %v46
  %v49 = vmul.f32 %v47, %v47
  %v50 = vmul.f32 %v48, %v48
  %v51 = vsel %vm31, %v49, 0.0
  %52 = vadd.xlane.f32.xlu0 %v51
  %v53 = vpop.xlane.xlu0 %52
  %v54 = vsel %vm31, %v50, 0.0
  %55 = vadd.xlane.f32.xlu0 %v54
  %v56 = vpop.xlane.xlu0 %55
  %v57 = vmul.f32 %v53, %v44
  %v58 = vmul.f32 %v56, %v44
  %v59 = vadd.f32 %v57, 1e-05
  %v60 = vadd.f32 %v58, 1e-05
  %v61 = vrsqrt.pop %v59
  %v62 = vmul.f32 %v61, %v59
  %v63 = vmul.f32 %v62, %v61
  %v64 = vmul.f32 0.5, %v63
  %v65 = vsub.f32 1.5, %v64
  %v66 = vmul.f32 %v61, %v65
  %vm67 = vweird.f32 %v59
  %vm68 = vweird.f32 %v61
  %vm69 = vmor %vm67, %vm68
  %v70 = vsel %vm69, %v61, %v66
  %v71 = vrsqrt.pop %v60
  %v72 = vmul.f32 %v71, %v60
  %v73 = vmul.f32 %v72, %v71
  %v74 = vmul.f32 0.5, %v73
  %v75 = vsub.f32 1.5, %v74
  %v76 = vmul.f32 %v71, %v75
  %vm77 = vweird.f32 %v60
  %vm78 = vweird.f32 %v71
  %vm79 = vmor %vm77, %vm78
  %v80 = vsel %vm79, %v71, %v76
  %v81 = vmul.f32 %v47, %v70
  %v82 = vmul.f32 %v48, %v80
  %v84 = vperm.slane %v29, 0
  %v86 = vmul.f32 %v81, %v84
  %v87 = vmul.f32 %v82, %v84
  %v89 = vperm.slane %v30, 0
  %v91 = vadd.f32 %v86, %v89
  %v92 = vadd.f32 %v87, %v89
  %v93 = vpack.c.bf16 %v92, %v91
  %v94 = vld [vmem:[%s3] sm:$0xf]
  %v95 = vld [vmem:[%s3 + $0x4] sm:$0xf]
  %v96 = vld [vmem:[%s3 + $0x8] sm:$0xf]
  %v97 = vld [vmem:[%s3 + $0xc] sm:$0xf]
  %v98 = vld [vmem:[%s4] sm:$0x1]
  %v100 = vperm.slane %v98, 0
  %v106 = vunpack.c.l.b16 %v94
  %v107 = vunpack.c.l.b16 %v95
  %v108 = vunpack.c.l.b16 %v96
  %v109 = vunpack.c.l.b16 %v97
  %v110 = vpack.c.b16 %v107, %v106
  %v111 = vpack.c.b16 %v109, %v108
  %v115 = vsel %vm31, %v93, 0
  %117 = vmatpush.bf16.msra.mxu0 0
  %118 = vmatpush.bf16.msra.mxu0 0
  %119 = vmatpush.bf16.msra.mxu0 0
  %120 = vmatpush.bf16.msra.mxu0 0
  %121 = vmatpush.bf16.msra.mxu0 0
  %122 = vmatpush.bf16.msra.mxu0 0
  %123 = vmatpush.bf16.msra.mxu0 %v111
  %124 = vmatpush.bf16.msra.mxu0 %v110
  %125 = vmatmul.bf16.gmra.mxu0 %v115
  %v126 = vpop.f32.mrf.mxu0
  %v127 = vadd.f32 %v100, %v126
  %v128 = vpop.f32.mrf.mxu0
  %v129 = vadd.f32 %v100, %v128
  %130 = vdwg.mxu0
  %v131 = vmul.f32 %v127, 1.702
  %v132 = vmul.f32 %v129, 1.702
  %v133 = vxor.u32 %v131, 2147483648
  %v134 = vxor.u32 %v132, 2147483648
  %v135 = vmul.f32 %v133, 1.442695
  %v136 = vpow.pop %v135
  %v137 = vmul.f32 %v134, 1.442695
  %v138 = vpow.pop %v137
  %v139 = vadd.f32 %v136, 1.0
  %v140 = vadd.f32 %v138, 1.0
  %v141 = vrcp.pop %v139
  %v142 = vmul.f32 %v139, %v141
  %v143 = vsub.f32 1.0, %v142
  %v144 = vmul.f32 %v141, %v143
  %v145 = vadd.f32 %v141, %v144
  %vm146 = vweird.f32 %v139
  %vm147 = vweird.f32 %v141
  %vm148 = vmor %vm146, %vm147
  %v149 = vsel %vm148, %v141, %v145
  %v150 = vand.u32 2147483647, %v139
  %vm151 = vcmp.eq.f32.partialorder %v150, 8.507059e+37
  %v152 = vand.u32 %v139, 2147483648
  %v153 = vor.u32 1.1754944e-38, %v152
  %v154 = vsel %vm151, %v153, %v149
  %v155 = vmul.f32 1.0, %v154
  %v156 = vrcp.pop %v140
  %v157 = vmul.f32 %v140, %v156
  %v158 = vsub.f32 1.0, %v157
  %v159 = vmul.f32 %v156, %v158
  %v160 = vadd.f32 %v156, %v159
  %vm161 = vweird.f32 %v140
  %vm162 = vweird.f32 %v156
  %vm163 = vmor %vm161, %vm162
  %v164 = vsel %vm163, %v156, %v160
  %v165 = vand.u32 2147483647, %v140
  %vm166 = vcmp.eq.f32.partialorder %v165, 8.507059e+37
  %v167 = vand.u32 %v140, 2147483648
  %v168 = vor.u32 1.1754944e-38, %v167
  %v169 = vsel %vm166, %v168, %v164
  %v170 = vmul.f32 1.0, %v169
  %v171 = vmul.f32 %v127, %v155
  %v172 = vmul.f32 %v129, %v170
  %v173 = vpack.c.bf16 %v172, %v171
  %v174 = vld [vmem:[%s5] sm:$0xf]
  %v175 = vld [vmem:[%s5 + $0x4] sm:$0xf]
  %v176 = vld [vmem:[%s5 + $0x8] sm:$0xf]
  %v177 = vld [vmem:[%s5 + $0xc] sm:$0xf]
  %v178 = vld [vmem:[%s5 + $0x10] sm:$0xf]
  %v179 = vld [vmem:[%s5 + $0x14] sm:$0xf]
  %v180 = vld [vmem:[%s5 + $0x18] sm:$0xf]
  %v181 = vld [vmem:[%s5 + $0x1c] sm:$0xf]
  %v182 = vld [vmem:[%s5 + $0x20] sm:$0xf]
  %v183 = vld [vmem:[%s5 + $0x24] sm:$0xf]
  %v184 = vld [vmem:[%s5 + $0x28] sm:$0xf]
  %v185 = vld [vmem:[%s5 + $0x2c] sm:$0xf]
  %v186 = vld [vmem:[%s5 + $0x30] sm:$0xf]
  %v187 = vld [vmem:[%s5 + $0x34] sm:$0xf]
  %v188 = vld [vmem:[%s5 + $0x38] sm:$0xf]
  %v189 = vld [vmem:[%s5 + $0x3c] sm:$0xf]
  %v190 = vld [vmem:[%s6] sm:$0x1]
  %v192 = vperm.slane %v190, 0
  %v210 = vunpack.c.l.b16 %v174
  %v211 = vunpack.c.l.b16 %v175
  %v212 = vunpack.c.l.b16 %v176
  %v213 = vunpack.c.l.b16 %v177
  %v214 = vunpack.c.l.b16 %v178
  %v215 = vunpack.c.l.b16 %v179
  %v216 = vunpack.c.l.b16 %v180
  %v217 = vunpack.c.l.b16 %v181
  %v218 = vunpack.c.l.b16 %v182
  %v219 = vunpack.c.l.b16 %v183
  %v220 = vunpack.c.l.b16 %v184
  %v221 = vunpack.c.l.b16 %v185
  %v222 = vunpack.c.l.b16 %v186
  %v223 = vunpack.c.l.b16 %v187
  %v224 = vunpack.c.l.b16 %v188
  %v225 = vunpack.c.l.b16 %v189
  %v226 = vpack.c.b16 %v211, %v210
  %v227 = vpack.c.b16 %v213, %v212
  %v228 = vpack.c.b16 %v215, %v214
  %v229 = vpack.c.b16 %v217, %v216
  %v230 = vpack.c.b16 %v219, %v218
  %v231 = vpack.c.b16 %v221, %v220
  %v232 = vpack.c.b16 %v223, %v222
  %v233 = vpack.c.b16 %v225, %v224
  %242 = vmatpush.bf16.msra.mxu0 %v233
  %243 = vmatpush.bf16.msra.mxu0 %v232
  %244 = vmatpush.bf16.msra.mxu0 %v231
  %245 = vmatpush.bf16.msra.mxu0 %v230
  %246 = vmatpush.bf16.msra.mxu0 %v229
  %247 = vmatpush.bf16.msra.mxu0 %v228
  %248 = vmatpush.bf16.msra.mxu0 %v227
  %249 = vmatpush.bf16.msra.mxu0 %v226
  %250 = vmatmul.bf16.gmra.mxu0 %v173
  %v251 = vpop.f32.mrf.mxu0
  %v252 = vadd.f32 %v192, %v251
  %v253 = vpop.f32.mrf.mxu0
  %v254 = vadd.f32 %v192, %v253
  %255 = vdwg.mxu0
  %v256 = vadd.f32 %v27, %v252
  %v257 = vadd.f32 %v28, %v254
  %258 = vst.msk [vmem:[%s7] sm:$0xff] %vm31, %v256
  %259 = vst.msk [vmem:[%s7 + $0x8] sm:$0xff] %vm31, %v257
  // Predicated region
  $region30: #{_lambda_.11} parent=0 // pred_check
    _
  $region31: #{_lambda_.11} parent=0 // pred_check_branch
    %261 = sbr.rel (0) target = $region33
  $region32: #{_lambda_.11} parent=0 // pred_region
    _
  $region33: #{_lambda_.11} parent=0 // pred_fallthru
    _
  // Predicated region
  $region34: #{_lambda_.11} parent=0 // pred_check
    _
  $region35: #{_lambda_.11} parent=0 // pred_check_branch
    %263 = sbr.rel (0) target = $region37
  $region36: #{_lambda_.11} parent=0 // pred_region
    _
  $region37: #{_lambda_.11} parent=0 // pred_fallthru
    _

// kernel: _lambda_.15
$region0: #{_lambda_.15}
  #allocation0 [shape = 'u32[]', space=smem, size = 0x4, offset = 0x4, fixed_abs, tag = 'smem constant byte address 0x4 - core index']
  #allocation1 [shape = 'u32[72,128]{1,0:T(1,128)}', space=vmem, size = 0x9000, scoped, tag = 'internal scratch']
  %s0 = inlined_call_operand.vmem [shape: f32[16,32], index: 0, kind: input, shape index: {}]
  %s1 = inlined_call_operand.vmem [shape: f32[1,32], index: 1, kind: input, shape index: {}]
  %s2 = inlined_call_operand.vmem [shape: f32[1,32], index: 2, kind: input, shape index: {}]
  %s3 = inlined_call_operand.vmem [shape: bf16[32,128], index: 3, kind: input, shape index: {}]
  %s4 = inlined_call_operand.vmem [shape: f32[1,128], index: 4, kind: input, shape index: {}]
  %s5 = inlined_call_operand.vmem [shape: bf16[128,32], index: 5, kind: input, shape index: {}]
  %s6 = inlined_call_operand.vmem [shape: f32[1,32], index: 6, kind: input, shape index: {}]
  %s7 = inlined_call_operand.hbm [shape: f32[16,32], index: 7, kind: output, shape index: {}]
  %s8 = sld [smem:[#allocation0]]
  $region38: #{_lambda_.15} parent=0
    _
  %s10 = ssub.s32 1, %s8
  %s11 = scalar_select 0, %s10, %s8
  $region1: #{_lambda_.15} parent=0
    #allocation2 [shape = 'u8[8192]{0}', space=vmem, size = 0x2000, scoped, tag = 'output window, operand 0, single buffered']
    #allocation3 [shape = 's32[1]{0}', space=sflag, size = 0x4, scoped, tag = 'scoped memory for _lambda_.15']
    %12 = vsyncpa [#allocation3], 0
    // Predicated region
    $region2: #{_lambda_.15} parent=1 // pred_check
      _
    $region3: #{_lambda_.15} parent=1 // pred_check_branch
      %14 = sbr.rel (0) target = $region5
    $region4: #{_lambda_.15} parent=1 // pred_region
      _
    $region5: #{_lambda_.15} parent=1 // pred_fallthru
      _
    // Predicated region
    $region6: #{_lambda_.15} parent=1 // pred_check
      _
    $region7: #{_lambda_.15} parent=1 // pred_check_branch
      %16 = sbr.rel (0) target = $region9
    $region8: #{_lambda_.15} parent=1 // pred_region
      _
    $region9: #{_lambda_.15} parent=1 // pred_fallthru
      _
    // Predicated region
    $region10: #{_lambda_.15} parent=1 // pred_check
      _
    $region11: #{_lambda_.15} parent=1 // pred_check_branch
      %18 = sbr.rel (0) target = $region13
    $region12: #{_lambda_.15} parent=1 // pred_region
      _
    $region13: #{_lambda_.15} parent=1 // pred_fallthru
      _
    // Predicated region
    $region14: #{_lambda_.15} parent=1 // pred_check
      _
    $region15: #{_lambda_.15} parent=1 // pred_check_branch
      %20 = sbr.rel (0) target = $region17
    $region16: #{_lambda_.15} parent=1 // pred_region
      _
    $region17: #{_lambda_.15} parent=1 // pred_fallthru
      _
    // Predicated region
    $region18: #{_lambda_.15} parent=1 // pred_check
      _
    $region19: #{_lambda_.15} parent=1 // pred_check_branch
      %22 = sbr.rel (0) target = $region21
    $region20: #{_lambda_.15} parent=1 // pred_region
      _
    $region21: #{_lambda_.15} parent=1 // pred_fallthru
      _
    // Predicated region
    $region22: #{_lambda_.15} parent=1 // pred_check
      _
    $region23: #{_lambda_.15} parent=1 // pred_check_branch
      %24 = sbr.rel (0) target = $region25
    $region24: #{_lambda_.15} parent=1 // pred_region
      _
    $region25: #{_lambda_.15} parent=1 // pred_fallthru
      _
    // Predicated region
    $region26: #{_lambda_.15} parent=1 // pred_check
      _
    $region27: #{_lambda_.15} parent=1 // pred_check_branch
      %26 = sbr.rel (0) target = $region29
    $region28: #{_lambda_.15} parent=1 // pred_region
      _
    $region29: #{_lambda_.15} parent=1 // pred_fallthru
      _
    %v28 = vld [vmem:[%s0] sm:$0xff]
    %v29 = vld [vmem:[%s0 + $0x8] sm:$0xff]
    %v30 = vld [vmem:[%s1] sm:$0x1]
    %v31 = vld [vmem:[%s2] sm:$0x1]
    %vm32 = vcmask 261120
    %v33 = vsel %vm32, %v28, 0.0
    %34 = vadd.xlane.f32.xlu0 %v33
    %v35 = vpop.xlane.xlu0 %34
    %v36 = vsel %vm32, %v29, 0.0
    %37 = vadd.xlane.f32.xlu0 %v36
    %v38 = vpop.xlane.xlu0 %37
    %v39 = vrcp.pop 32.0
    %v40 = vmul.f32 32.0, %v39
    %v41 = vsub.f32 1.0, %v40
    %v42 = vmul.f32 %v39, %v41
    %v43 = vadd.f32 %v39, %v42
    %vm44 = vweird.f32 %v39
    %v45 = vsel %vm44, %v39, %v43
    %v46 = vmul.f32 %v35, %v45
    %v47 = vmul.f32 %v38, %v45
    %v48 = vsub.f32 %v28, %v46
    %v49 = vsub.f32 %v29, %v47
    %v50 = vmul.f32 %v48, %v48
    %v51 = vmul.f32 %v49, %v49
    %v52 = vsel %vm32, %v50, 0.0
    %53 = vadd.xlane.f32.xlu0 %v52
    %v54 = vpop.xlane.xlu0 %53
    %v55 = vsel %vm32, %v51, 0.0
    %56 = vadd.xlane.f32.xlu0 %v55
    %v57 = vpop.xlane.xlu0 %56
    %v58 = vmul.f32 %v54, %v45
    %v59 = vmul.f32 %v57, %v45
    %v60 = vadd.f32 %v58, 1e-05
    %v61 = vadd.f32 %v59, 1e-05
    %v62 = vrsqrt.pop %v60
    %v63 = vmul.f32 %v62, %v60
    %v64 = vmul.f32 %v63, %v62
    %v65 = vmul.f32 0.5, %v64
    %v66 = vsub.f32 1.5, %v65
    %v67 = vmul.f32 %v62, %v66
    %vm68 = vweird.f32 %v60
    %vm69 = vweird.f32 %v62
    %vm70 = vmor %vm68, %vm69
    %v71 = vsel %vm70, %v62, %v67
    %v72 = vrsqrt.pop %v61
    %v73 = vmul.f32 %v72, %v61
    %v74 = vmul.f32 %v73, %v72
    %v75 = vmul.f32 0.5, %v74
    %v76 = vsub.f32 1.5, %v75
    %v77 = vmul.f32 %v72, %v76
    %vm78 = vweird.f32 %v61
    %vm79 = vweird.f32 %v72
    %vm80 = vmor %vm78, %vm79
    %v81 = vsel %vm80, %v72, %v77
    %v82 = vmul.f32 %v48, %v71
    %v83 = vmul.f32 %v49, %v81
    %v85 = vperm.slane %v30, 0
    %v87 = vmul.f32 %v82, %v85
    %v88 = vmul.f32 %v83, %v85
    %v90 = vperm.slane %v31, 0
    %v92 = vadd.f32 %v87, %v90
    %v93 = vadd.f32 %v88, %v90
    %v94 = vpack.c.bf16 %v93, %v92
    %v95 = vld [vmem:[%s3] sm:$0xf]
    %v96 = vld [vmem:[%s3 + $0x4] sm:$0xf]
    %v97 = vld [vmem:[%s3 + $0x8] sm:$0xf]
    %v98 = vld [vmem:[%s3 + $0xc] sm:$0xf]
    %v99 = vld [vmem:[%s4] sm:$0x1]
    %v101 = vperm.slane %v99, 0
    %v107 = vunpack.c.l.b16 %v95
    %v108 = vunpack.c.l.b16 %v96
    %v109 = vunpack.c.l.b16 %v97
    %v110 = vunpack.c.l.b16 %v98
    %v111 = vpack.c.b16 %v108, %v107
    %v112 = vpack.c.b16 %v110, %v109
    %v116 = vsel %vm32, %v94, 0
    %118 = vmatpush.bf16.msra.mxu0 0
    %119 = vmatpush.bf16.msra.mxu0 0
    %120 = vmatpush.bf16.msra.mxu0 0
    %121 = vmatpush.bf16.msra.mxu0 0
    %122 = vmatpush.bf16.msra.mxu0 0
    %123 = vmatpush.bf16.msra.mxu0 0
    %124 = vmatpush.bf16.msra.mxu0 %v112
    %125 = vmatpush.bf16.msra.mxu0 %v111
    %126 = vmatmul.bf16.gmra.mxu0 %v116
    %v127 = vpop.f32.mrf.mxu0
    %v128 = vadd.f32 %v101, %v127
    %v129 = vpop.f32.mrf.mxu0
    %v130 = vadd.f32 %v101, %v129
    %131 = vdwg.mxu0
    %v132 = vmul.f32 %v128, 1.702
    %v133 = vmul.f32 %v130, 1.702
    %v134 = vxor.u32 %v132, 2147483648
    %v135 = vxor.u32 %v133, 2147483648
    %v136 = vmul.f32 %v134, 1.442695
    %v137 = vpow.pop %v136
    %v138 = vmul.f32 %v135, 1.442695
    %v139 = vpow.pop %v138
    %v140 = vadd.f32 %v137, 1.0
    %v141 = vadd.f32 %v139, 1.0
    %v142 = vrcp.pop %v140
    %v143 = vmul.f32 %v140, %v142
    %v144 = vsub.f32 1.0, %v143
    %v145 = vmul.f32 %v142, %v144
    %v146 = vadd.f32 %v142, %v145
    %vm147 = vweird.f32 %v140
    %vm148 = vweird.f32 %v142
    %vm149 = vmor %vm147, %vm148
    %v150 = vsel %vm149, %v142, %v146
    %v151 = vand.u32 2147483647, %v140
    %vm152 = vcmp.eq.f32.partialorder %v151, 8.507059e+37
    %v153 = vand.u32 %v140, 2147483648
    %v154 = vor.u32 1.1754944e-38, %v153
    %v155 = vsel %vm152, %v154, %v150
    %v156 = vmul.f32 1.0, %v155
    %v157 = vrcp.pop %v141
    %v158 = vmul.f32 %v141, %v157
    %v159 = vsub.f32 1.0, %v158
    %v160 = vmul.f32 %v157, %v159
    %v161 = vadd.f32 %v157, %v160
    %vm162 = vweird.f32 %v141
    %vm163 = vweird.f32 %v157
    %vm164 = vmor %vm162, %vm163
    %v165 = vsel %vm164, %v157, %v161
    %v166 = vand.u32 2147483647, %v141
    %vm167 = vcmp.eq.f32.partialorder %v166, 8.507059e+37
    %v168 = vand.u32 %v141, 2147483648
    %v169 = vor.u32 1.1754944e-38, %v168
    %v170 = vsel %vm167, %v169, %v165
    %v171 = vmul.f32 1.0, %v170
    %v172 = vmul.f32 %v128, %v156
    %v173 = vmul.f32 %v130, %v171
    %v174 = vpack.c.bf16 %v173, %v172
    %v175 = vld [vmem:[%s5] sm:$0xf]
    %v176 = vld [vmem:[%s5 + $0x4] sm:$0xf]
    %v177 = vld [vmem:[%s5 + $0x8] sm:$0xf]
    %v178 = vld [vmem:[%s5 + $0xc] sm:$0xf]
    %v179 = vld [vmem:[%s5 + $0x10] sm:$0xf]
    %v180 = vld [vmem:[%s5 + $0x14] sm:$0xf]
    %v181 = vld [vmem:[%s5 + $0x18] sm:$0xf]
    %v182 = vld [vmem:[%s5 + $0x1c] sm:$0xf]
    %v183 = vld [vmem:[%s5 + $0x20] sm:$0xf]
    %v184 = vld [vmem:[%s5 + $0x24] sm:$0xf]
    %v185 = vld [vmem:[%s5 + $0x28] sm:$0xf]
    %v186 = vld [vmem:[%s5 + $0x2c] sm:$0xf]
    %v187 = vld [vmem:[%s5 + $0x30] sm:$0xf]
    %v188 = vld [vmem:[%s5 + $0x34] sm:$0xf]
    %v189 = vld [vmem:[%s5 + $0x38] sm:$0xf]
    %v190 = vld [vmem:[%s5 + $0x3c] sm:$0xf]
    %v191 = vld [vmem:[%s6] sm:$0x1]
    %v193 = vperm.slane %v191, 0
    %v211 = vunpack.c.l.b16 %v175
    %v212 = vunpack.c.l.b16 %v176
    %v213 = vunpack.c.l.b16 %v177
    %v214 = vunpack.c.l.b16 %v178
    %v215 = vunpack.c.l.b16 %v179
    %v216 = vunpack.c.l.b16 %v180
    %v217 = vunpack.c.l.b16 %v181
    %v218 = vunpack.c.l.b16 %v182
    %v219 = vunpack.c.l.b16 %v183
    %v220 = vunpack.c.l.b16 %v184
    %v221 = vunpack.c.l.b16 %v185
    %v222 = vunpack.c.l.b16 %v186
    %v223 = vunpack.c.l.b16 %v187
    %v224 = vunpack.c.l.b16 %v188
    %v225 = vunpack.c.l.b16 %v189
    %v226 = vunpack.c.l.b16 %v190
    %v227 = vpack.c.b16 %v212, %v211
    %v228 = vpack.c.b16 %v214, %v213
    %v229 = vpack.c.b16 %v216, %v215
    %v230 = vpack.c.b16 %v218, %v217
    %v231 = vpack.c.b16 %v220, %v219
    %v232 = vpack.c.b16 %v222, %v221
    %v233 = vpack.c.b16 %v224, %v223
    %v234 = vpack.c.b16 %v226, %v225
    %243 = vmatpush.bf16.msra.mxu0 %v234
    %244 = vmatpush.bf16.msra.mxu0 %v233
    %245 = vmatpush.bf16.msra.mxu0 %v232
    %246 = vmatpush.bf16.msra.mxu0 %v231
    %247 = vmatpush.bf16.msra.mxu0 %v230
    %248 = vmatpush.bf16.msra.mxu0 %v229
    %249 = vmatpush.bf16.msra.mxu0 %v228
    %250 = vmatpush.bf16.msra.mxu0 %v227
    %251 = vmatmul.bf16.gmra.mxu0 %v174
    %v252 = vpop.f32.mrf.mxu0
    %v253 = vadd.f32 %v193, %v252
    %v254 = vpop.f32.mrf.mxu0
    %v255 = vadd.f32 %v193, %v254
    %256 = vdwg.mxu0
    %v257 = vadd.f32 %v28, %v253
    %v258 = vadd.f32 %v29, %v255
    %259 = vst.msk [vmem:[#allocation2] sm:$0xff] %vm32, %v257
    %260 = vst.msk [vmem:[#allocation2 + $0x8] sm:$0xff] %vm32, %v258
    // Predicated region
    $region30: #{_lambda_.15} parent=1 // pred_check
      _
    $region31: #{_lambda_.15} parent=1 // pred_check_branch
      %262 = sbr.rel (0) target = $region33
    $region32: #{_lambda_.15} parent=1 // pred_region
      %264 = vsyncadd [#allocation3], 0
      %s265 = sshll.u32 [#allocation2], 4
      %s266 = int_to_ptr.vmem [resolvable:$true] %s265
      %s267 = sshll.u32 %s7, 4
      %s268 = int_to_ptr.hbm [resolvable:$true] %s267
      %273 = dma.vmem_to_hbm [thread:$0]  %s266, 256, %s268, [#allocation3], 128, 128, 8
    $region33: #{_lambda_.15} parent=1 // pred_fallthru
      _
    // Predicated region
    $region34: #{_lambda_.15} parent=1 // pred_check
      _
    $region35: #{_lambda_.15} parent=1 // pred_check_branch
      %275 = sbr.rel (0) target = $region37
    $region36: #{_lambda_.15} parent=1 // pred_region
      %277 = dma.done [#allocation3], 256
    $region37: #{_lambda_.15} parent=1 // pred_fallthru
      _
    %278 = vsyncpa [#allocation3], 1

</llo_original>
